<compile_context>
chip_gen: v6e
topology: v6e:2x2x1
jax: 0.10.0
libtpu: 0.0.40
codegen_flags: <defaults>
</compile_context>

<pallas_src>
import jax
import jax.numpy as jnp
from jax.experimental import pallas as pl
from jax.experimental.pallas import tpu as pltpu

HIDDEN = (512, 256, 128, 64)
DROPOUT_P = 0.5
BN_EPS = 1e-5
LRELU_SLOPE = 0.01  # torch F.leaky_relu default


def mlp_kernel(x_ref, w1_ref, w2_ref, w3_ref, w4_ref, w5_ref,
               p_ref, mask_ref, out_ref):
    """Fused forward pass.  p_ref rows: [g1,b1, g2,b2, g3,b3, g4,b4, fc5_bias]."""

    def matmul(h, w_ref):
        # bf16 operands on the MXU, f32 accumulation.
        return jnp.dot(h.astype(jnp.bfloat16), w_ref[...],
                       preferred_element_type=jnp.float32)

    def bn_lrelu(h, row):
        # BatchNorm1d training mode, single-pass stats (sum + sum of squares).
        n = h.shape[-1]
        inv_b = 1.0 / h.shape[0]
        s1 = jnp.sum(h, axis=0, keepdims=True)
        s2 = jnp.sum(h * h, axis=0, keepdims=True)
        mean = s1 * inv_b
        var = jnp.maximum(s2 * inv_b - mean * mean, 0.0)  # biased variance
        gamma = p_ref[row:row + 1, 0:n]
        beta = p_ref[row + 1:row + 2, 0:n]
        hn = (h - mean) * jax.lax.rsqrt(var + BN_EPS) * gamma + beta
        return jnp.where(hn > 0, hn, LRELU_SLOPE * hn)

    x = x_ref[...]
    masks = mask_ref[...]  # precomputed dropout masks, values in {0, 1/(1-p)}

    n1 = w1_ref.shape[1]
    n2 = w2_ref.shape[1]
    n3 = w3_ref.shape[1]

    # Pre-BN biases (fc1..fc4) are dropped: exact no-op under training-mode BatchNorm.
    h = bn_lrelu(matmul(x, w1_ref), 0) * masks[:, 0:n1]
    h = bn_lrelu(matmul(h, w2_ref), 2) * masks[:, n1:n1 + n2]
    h = bn_lrelu(matmul(h, w3_ref), 4) * masks[:, n1 + n2:n1 + n2 + n3]
    h = bn_lrelu(matmul(h, w4_ref), 6)  # no dropout after the 4th block

    b5 = p_ref[8:9, 0:out_ref.shape[-1]]
    out_ref[...] = (matmul(h, w5_ref) + b5).astype(out_ref.dtype)


def init_mlp_params(key, input_size, output_size):
    """Weights as bf16 [in, out] (transpose of torch layout) + packed small params."""
    assert output_size <= 512
    dims = [input_size, *HIDDEN, output_size]
    weights = []
    packed = jnp.zeros((9, 512), dtype=jnp.float32)  # g1,b1,...,g4,b4, fc5 bias
    for i in range(5):
        fan_in, fan_out = dims[i], dims[i + 1]
        key, kw = jax.random.split(key)
        # kaiming_normal_ (fan_in mode, gain sqrt(2)); stored as [in, out].
        std = (2.0 / fan_in) ** 0.5
        w = std * jax.random.normal(kw, (fan_in, fan_out), dtype=jnp.float32)
        weights.append(w.astype(jnp.bfloat16))
        if i < 4:
            # BatchNorm1d default affine init: gamma = 1 (beta row stays 0).
            # fc1..fc4 biases are intentionally not materialized (cancelled by BN).
            packed = packed.at[2 * i, :fan_out].set(1.0)
        else:
            # torch Linear default bias init for fc5: U(-1/sqrt(fan_in), 1/sqrt(fan_in)).
            key, kb = jax.random.split(key)
            bound = 1.0 / (fan_in ** 0.5)
            b5 = jax.random.uniform(kb, (fan_out,), minval=-bound, maxval=bound,
                                    dtype=jnp.float32)
            packed = packed.at[8, :fan_out].set(b5)
    return weights, packed


def make_dropout_masks(key, batch, p=DROPOUT_P):
    # One packed (B, 512+256+128) array of {0, 1/(1-p)} values -> a single DMA.
    # TODO(synk): switch back to in-kernel pltpu.prng_random_bits once the target
    # toolchain supports it outside interpret mode (saves the mask HBM traffic).
    total = HIDDEN[0] + HIDDEN[1] + HIDDEN[2]
    u = jax.random.uniform(key, (batch, total), dtype=jnp.float32)
    return (u >= p).astype(jnp.float32) * (1.0 / (1.0 - p))


def mlp_forward(x, weights, packed_params, dropout_masks):
    B = x.shape[0]
    output_size = weights[-1].shape[-1]
    vmem = pl.BlockSpec(memory_space=pltpu.MemorySpace.VMEM)
    return pl.pallas_call(
        mlp_kernel,
        out_shape=jax.ShapeDtypeStruct((B, output_size), jnp.float32),
        in_specs=[vmem] * 8,
        out_specs=vmem,
    )(x, *weights, packed_params, dropout_masks)


if __name__ == "__main__":
    INPUT_SIZE = 256
    OUTPUT_SIZE = 32
    BATCH = 8

    key = jax.random.PRNGKey(0)
    key, kx, kp, km = jax.random.split(key, 4)

    x = jax.random.normal(kx, (BATCH, INPUT_SIZE), dtype=jnp.float32)
    weights, packed_params = init_mlp_params(kp, INPUT_SIZE, OUTPUT_SIZE)
    dropout_masks = make_dropout_masks(km, BATCH)

    out = mlp_forward(x, weights, packed_params, dropout_masks)
    out = jax.block_until_ready(out)

    assert out.shape == (BATCH, OUTPUT_SIZE), out.shape
    assert bool(jnp.all(jnp.isfinite(out)))
    print("KERNEL_OK")
</pallas_src>

<mosaic_0001>
module attributes {stable_mosaic.version = 11 : i64} {
  func.func @mlp_kernel(%arg0: memref<8x256xf32, #tpu.memory_space<vmem>>, %arg1: memref<256x512xbf16, #tpu.memory_space<vmem>>, %arg2: memref<512x256xbf16, #tpu.memory_space<vmem>>, %arg3: memref<256x128xbf16, #tpu.memory_space<vmem>>, %arg4: memref<128x64xbf16, #tpu.memory_space<vmem>>, %arg5: memref<64x32xbf16, #tpu.memory_space<vmem>>, %arg6: memref<9x512xf32, #tpu.memory_space<vmem>>, %arg7: memref<8x896xf32, #tpu.memory_space<vmem>>, %arg8: memref<8x32xf32, #tpu.memory_space<vmem>>) attributes {dimension_semantics = [], scalar_prefetch = 0 : i64, scratch_operands = 0 : i64, tpu.core_type = #tpu.core_type<tc>} {
    %c0 = arith.constant 0 : index
    %c0_0 = arith.constant 0 : index
    %0 = vector.load %arg0[%c0, %c0_0] : memref<8x256xf32, #tpu.memory_space<vmem>>, vector<8x256xf32>
    %c0_1 = arith.constant 0 : index
    %c0_2 = arith.constant 0 : index
    %1 = vector.load %arg7[%c0_1, %c0_2] : memref<8x896xf32, #tpu.memory_space<vmem>>, vector<8x896xf32>
    %2 = arith.truncf %0 : vector<8x256xf32> to vector<8x256xbf16>
    %c0_3 = arith.constant 0 : index
    %c0_4 = arith.constant 0 : index
    %3 = vector.load %arg1[%c0_3, %c0_4] : memref<256x512xbf16, #tpu.memory_space<vmem>>, vector<256x512xbf16>
    %cst = arith.constant dense<0.000000e+00> : vector<8x512xf32>
    %4 = tpu.matmul %2, %3, %cst {dimension_numbers = #tpu.dot_dimension_numbers<[1], [0], [0], [1], [0, 0, 1, 1], [], []>} : vector<8x256xbf16>, vector<256x512xbf16>, vector<8x512xf32> -> vector<8x512xf32>
    %cst_5 = arith.constant dense<0.000000e+00> : vector<512xf32>
    %5 = vector.multi_reduction <add>, %4, %cst_5 [0] : vector<8x512xf32> to vector<512xf32>
    %6 = vector.shape_cast %5 : vector<512xf32> to vector<1x512xf32>
    %7 = arith.mulf %4, %4 : vector<8x512xf32>
    %cst_6 = arith.constant dense<0.000000e+00> : vector<512xf32>
    %8 = vector.multi_reduction <add>, %7, %cst_6 [0] : vector<8x512xf32> to vector<512xf32>
    %9 = vector.shape_cast %8 : vector<512xf32> to vector<1x512xf32>
    %cst_7 = arith.constant 1.250000e-01 : f32
    %10 = vector.broadcast %cst_7 : f32 to vector<1x512xf32>
    %11 = arith.mulf %6, %10 : vector<1x512xf32>
    %cst_8 = arith.constant 1.250000e-01 : f32
    %12 = vector.broadcast %cst_8 : f32 to vector<1x512xf32>
    %13 = arith.mulf %9, %12 : vector<1x512xf32>
    %14 = arith.mulf %11, %11 : vector<1x512xf32>
    %15 = arith.subf %13, %14 : vector<1x512xf32>
    %cst_9 = arith.constant 0.000000e+00 : f32
    %16 = vector.broadcast %cst_9 : f32 to vector<1x512xf32>
    %17 = arith.maximumf %15, %16 : vector<1x512xf32>
    %c0_10 = arith.constant 0 : index
    %c0_11 = arith.constant 0 : index
    %18 = vector.load %arg6[%c0_10, %c0_11] : memref<9x512xf32, #tpu.memory_space<vmem>>, vector<1x512xf32>
    %c1 = arith.constant 1 : index
    %c0_12 = arith.constant 0 : index
    %19 = vector.load %arg6[%c1, %c0_12] : memref<9x512xf32, #tpu.memory_space<vmem>>, vector<1x512xf32>
    %20 = vector.broadcast %11 : vector<1x512xf32> to vector<8x512xf32>
    %21 = arith.subf %4, %20 : vector<8x512xf32>
    %cst_13 = arith.constant 9.99999974E-6 : f32
    %22 = vector.broadcast %cst_13 : f32 to vector<1x512xf32>
    %23 = arith.addf %17, %22 : vector<1x512xf32>
    %24 = math.rsqrt %23 : vector<1x512xf32>
    %25 = vector.broadcast %24 : vector<1x512xf32> to vector<8x512xf32>
    %26 = arith.mulf %21, %25 : vector<8x512xf32>
    %27 = vector.broadcast %18 : vector<1x512xf32> to vector<8x512xf32>
    %28 = arith.mulf %26, %27 : vector<8x512xf32>
    %29 = vector.broadcast %19 : vector<1x512xf32> to vector<8x512xf32>
    %30 = arith.addf %28, %29 : vector<8x512xf32>
    %cst_14 = arith.constant 0.000000e+00 : f32
    %31 = vector.broadcast %cst_14 : f32 to vector<8x512xf32>
    %32 = arith.cmpf ogt, %30, %31 : vector<8x512xf32>
    %cst_15 = arith.constant 0.00999999977 : f32
    %33 = vector.broadcast %cst_15 : f32 to vector<8x512xf32>
    %34 = arith.mulf %33, %30 : vector<8x512xf32>
    %35 = arith.select %32, %30, %34 : vector<8x512xi1>, vector<8x512xf32>
    %36 = vector.extract_strided_slice %1 {offsets = [0, 0], sizes = [8, 512], strides = [1, 1]} : vector<8x896xf32> to vector<8x512xf32>
    %37 = arith.mulf %35, %36 : vector<8x512xf32>
    %38 = arith.truncf %37 : vector<8x512xf32> to vector<8x512xbf16>
    %c0_16 = arith.constant 0 : index
    %c0_17 = arith.constant 0 : index
    %39 = vector.load %arg2[%c0_16, %c0_17] : memref<512x256xbf16, #tpu.memory_space<vmem>>, vector<512x256xbf16>
    %cst_18 = arith.constant dense<0.000000e+00> : vector<8x256xf32>
    %40 = tpu.matmul %38, %39, %cst_18 {dimension_numbers = #tpu.dot_dimension_numbers<[1], [0], [0], [1], [0, 0, 1, 1], [], []>} : vector<8x512xbf16>, vector<512x256xbf16>, vector<8x256xf32> -> vector<8x256xf32>
    %cst_19 = arith.constant dense<0.000000e+00> : vector<256xf32>
    %41 = vector.multi_reduction <add>, %40, %cst_19 [0] : vector<8x256xf32> to vector<256xf32>
    %42 = vector.shape_cast %41 : vector<256xf32> to vector<1x256xf32>
    %43 = arith.mulf %40, %40 : vector<8x256xf32>
    %cst_20 = arith.constant dense<0.000000e+00> : vector<256xf32>
    %44 = vector.multi_reduction <add>, %43, %cst_20 [0] : vector<8x256xf32> to vector<256xf32>
    %45 = vector.shape_cast %44 : vector<256xf32> to vector<1x256xf32>
    %cst_21 = arith.constant 1.250000e-01 : f32
    %46 = vector.broadcast %cst_21 : f32 to vector<1x256xf32>
    %47 = arith.mulf %42, %46 : vector<1x256xf32>
    %cst_22 = arith.constant 1.250000e-01 : f32
    %48 = vector.broadcast %cst_22 : f32 to vector<1x256xf32>
    %49 = arith.mulf %45, %48 : vector<1x256xf32>
    %50 = arith.mulf %47, %47 : vector<1x256xf32>
    %51 = arith.subf %49, %50 : vector<1x256xf32>
    %cst_23 = arith.constant 0.000000e+00 : f32
    %52 = vector.broadcast %cst_23 : f32 to vector<1x256xf32>
    %53 = arith.maximumf %51, %52 : vector<1x256xf32>
    %c2 = arith.constant 2 : index
    %c0_24 = arith.constant 0 : index
    %54 = vector.load %arg6[%c2, %c0_24] : memref<9x512xf32, #tpu.memory_space<vmem>>, vector<1x256xf32>
    %c3 = arith.constant 3 : index
    %c0_25 = arith.constant 0 : index
    %55 = vector.load %arg6[%c3, %c0_25] : memref<9x512xf32, #tpu.memory_space<vmem>>, vector<1x256xf32>
    %56 = vector.broadcast %47 : vector<1x256xf32> to vector<8x256xf32>
    %57 = arith.subf %40, %56 : vector<8x256xf32>
    %cst_26 = arith.constant 9.99999974E-6 : f32
    %58 = vector.broadcast %cst_26 : f32 to vector<1x256xf32>
    %59 = arith.addf %53, %58 : vector<1x256xf32>
    %60 = math.rsqrt %59 : vector<1x256xf32>
    %61 = vector.broadcast %60 : vector<1x256xf32> to vector<8x256xf32>
    %62 = arith.mulf %57, %61 : vector<8x256xf32>
    %63 = vector.broadcast %54 : vector<1x256xf32> to vector<8x256xf32>
    %64 = arith.mulf %62, %63 : vector<8x256xf32>
    %65 = vector.broadcast %55 : vector<1x256xf32> to vector<8x256xf32>
    %66 = arith.addf %64, %65 : vector<8x256xf32>
    %cst_27 = arith.constant 0.000000e+00 : f32
    %67 = vector.broadcast %cst_27 : f32 to vector<8x256xf32>
    %68 = arith.cmpf ogt, %66, %67 : vector<8x256xf32>
    %cst_28 = arith.constant 0.00999999977 : f32
    %69 = vector.broadcast %cst_28 : f32 to vector<8x256xf32>
    %70 = arith.mulf %69, %66 : vector<8x256xf32>
    %71 = arith.select %68, %66, %70 : vector<8x256xi1>, vector<8x256xf32>
    %72 = vector.extract_strided_slice %1 {offsets = [0, 512], sizes = [8, 256], strides = [1, 1]} : vector<8x896xf32> to vector<8x256xf32>
    %73 = arith.mulf %71, %72 : vector<8x256xf32>
    %74 = arith.truncf %73 : vector<8x256xf32> to vector<8x256xbf16>
    %c0_29 = arith.constant 0 : index
    %c0_30 = arith.constant 0 : index
    %75 = vector.load %arg3[%c0_29, %c0_30] : memref<256x128xbf16, #tpu.memory_space<vmem>>, vector<256x128xbf16>
    %cst_31 = arith.constant dense<0.000000e+00> : vector<8x128xf32>
    %76 = tpu.matmul %74, %75, %cst_31 {dimension_numbers = #tpu.dot_dimension_numbers<[1], [0], [0], [1], [0, 0, 1, 1], [], []>} : vector<8x256xbf16>, vector<256x128xbf16>, vector<8x128xf32> -> vector<8x128xf32>
    %cst_32 = arith.constant dense<0.000000e+00> : vector<128xf32>
    %77 = vector.multi_reduction <add>, %76, %cst_32 [0] : vector<8x128xf32> to vector<128xf32>
    %78 = vector.shape_cast %77 : vector<128xf32> to vector<1x128xf32>
    %79 = arith.mulf %76, %76 : vector<8x128xf32>
    %cst_33 = arith.constant dense<0.000000e+00> : vector<128xf32>
    %80 = vector.multi_reduction <add>, %79, %cst_33 [0] : vector<8x128xf32> to vector<128xf32>
    %81 = vector.shape_cast %80 : vector<128xf32> to vector<1x128xf32>
    %cst_34 = arith.constant 1.250000e-01 : f32
    %82 = vector.broadcast %cst_34 : f32 to vector<1x128xf32>
    %83 = arith.mulf %78, %82 : vector<1x128xf32>
    %cst_35 = arith.constant 1.250000e-01 : f32
    %84 = vector.broadcast %cst_35 : f32 to vector<1x128xf32>
    %85 = arith.mulf %81, %84 : vector<1x128xf32>
    %86 = arith.mulf %83, %83 : vector<1x128xf32>
    %87 = arith.subf %85, %86 : vector<1x128xf32>
    %cst_36 = arith.constant 0.000000e+00 : f32
    %88 = vector.broadcast %cst_36 : f32 to vector<1x128xf32>
    %89 = arith.maximumf %87, %88 : vector<1x128xf32>
    %c4 = arith.constant 4 : index
    %c0_37 = arith.constant 0 : index
    %90 = vector.load %arg6[%c4, %c0_37] : memref<9x512xf32, #tpu.memory_space<vmem>>, vector<1x128xf32>
    %c5 = arith.constant 5 : index
    %c0_38 = arith.constant 0 : index
    %91 = vector.load %arg6[%c5, %c0_38] : memref<9x512xf32, #tpu.memory_space<vmem>>, vector<1x128xf32>
    %92 = vector.broadcast %83 : vector<1x128xf32> to vector<8x128xf32>
    %93 = arith.subf %76, %92 : vector<8x128xf32>
    %cst_39 = arith.constant 9.99999974E-6 : f32
    %94 = vector.broadcast %cst_39 : f32 to vector<1x128xf32>
    %95 = arith.addf %89, %94 : vector<1x128xf32>
    %96 = math.rsqrt %95 : vector<1x128xf32>
    %97 = vector.broadcast %96 : vector<1x128xf32> to vector<8x128xf32>
    %98 = arith.mulf %93, %97 : vector<8x128xf32>
    %99 = vector.broadcast %90 : vector<1x128xf32> to vector<8x128xf32>
    %100 = arith.mulf %98, %99 : vector<8x128xf32>
    %101 = vector.broadcast %91 : vector<1x128xf32> to vector<8x128xf32>
    %102 = arith.addf %100, %101 : vector<8x128xf32>
    %cst_40 = arith.constant 0.000000e+00 : f32
    %103 = vector.broadcast %cst_40 : f32 to vector<8x128xf32>
    %104 = arith.cmpf ogt, %102, %103 : vector<8x128xf32>
    %cst_41 = arith.constant 0.00999999977 : f32
    %105 = vector.broadcast %cst_41 : f32 to vector<8x128xf32>
    %106 = arith.mulf %105, %102 : vector<8x128xf32>
    %107 = arith.select %104, %102, %106 : vector<8x128xi1>, vector<8x128xf32>
    %108 = vector.extract_strided_slice %1 {offsets = [0, 768], sizes = [8, 128], strides = [1, 1]} : vector<8x896xf32> to vector<8x128xf32>
    %109 = arith.mulf %107, %108 : vector<8x128xf32>
    %110 = arith.truncf %109 : vector<8x128xf32> to vector<8x128xbf16>
    %c0_42 = arith.constant 0 : index
    %c0_43 = arith.constant 0 : index
    %111 = vector.load %arg4[%c0_42, %c0_43] : memref<128x64xbf16, #tpu.memory_space<vmem>>, vector<128x64xbf16>
    %cst_44 = arith.constant dense<0.000000e+00> : vector<8x64xf32>
    %112 = tpu.matmul %110, %111, %cst_44 {dimension_numbers = #tpu.dot_dimension_numbers<[1], [0], [0], [1], [0, 0, 1, 1], [], []>} : vector<8x128xbf16>, vector<128x64xbf16>, vector<8x64xf32> -> vector<8x64xf32>
    %cst_45 = arith.constant dense<0.000000e+00> : vector<64xf32>
    %113 = vector.multi_reduction <add>, %112, %cst_45 [0] : vector<8x64xf32> to vector<64xf32>
    %114 = vector.shape_cast %113 : vector<64xf32> to vector<1x64xf32>
    %115 = arith.mulf %112, %112 : vector<8x64xf32>
    %cst_46 = arith.constant dense<0.000000e+00> : vector<64xf32>
    %116 = vector.multi_reduction <add>, %115, %cst_46 [0] : vector<8x64xf32> to vector<64xf32>
    %117 = vector.shape_cast %116 : vector<64xf32> to vector<1x64xf32>
    %cst_47 = arith.constant 1.250000e-01 : f32
    %118 = vector.broadcast %cst_47 : f32 to vector<1x64xf32>
    %119 = arith.mulf %114, %118 : vector<1x64xf32>
    %cst_48 = arith.constant 1.250000e-01 : f32
    %120 = vector.broadcast %cst_48 : f32 to vector<1x64xf32>
    %121 = arith.mulf %117, %120 : vector<1x64xf32>
    %122 = arith.mulf %119, %119 : vector<1x64xf32>
    %123 = arith.subf %121, %122 : vector<1x64xf32>
    %cst_49 = arith.constant 0.000000e+00 : f32
    %124 = vector.broadcast %cst_49 : f32 to vector<1x64xf32>
    %125 = arith.maximumf %123, %124 : vector<1x64xf32>
    %c6 = arith.constant 6 : index
    %c0_50 = arith.constant 0 : index
    %126 = vector.load %arg6[%c6, %c0_50] : memref<9x512xf32, #tpu.memory_space<vmem>>, vector<1x64xf32>
    %c7 = arith.constant 7 : index
    %c0_51 = arith.constant 0 : index
    %127 = vector.load %arg6[%c7, %c0_51] : memref<9x512xf32, #tpu.memory_space<vmem>>, vector<1x64xf32>
    %128 = vector.broadcast %119 : vector<1x64xf32> to vector<8x64xf32>
    %129 = arith.subf %112, %128 : vector<8x64xf32>
    %cst_52 = arith.constant 9.99999974E-6 : f32
    %130 = vector.broadcast %cst_52 : f32 to vector<1x64xf32>
    %131 = arith.addf %125, %130 : vector<1x64xf32>
    %132 = math.rsqrt %131 : vector<1x64xf32>
    %133 = vector.broadcast %132 : vector<1x64xf32> to vector<8x64xf32>
    %134 = arith.mulf %129, %133 : vector<8x64xf32>
    %135 = vector.broadcast %126 : vector<1x64xf32> to vector<8x64xf32>
    %136 = arith.mulf %134, %135 : vector<8x64xf32>
    %137 = vector.broadcast %127 : vector<1x64xf32> to vector<8x64xf32>
    %138 = arith.addf %136, %137 : vector<8x64xf32>
    %cst_53 = arith.constant 0.000000e+00 : f32
    %139 = vector.broadcast %cst_53 : f32 to vector<8x64xf32>
    %140 = arith.cmpf ogt, %138, %139 : vector<8x64xf32>
    %cst_54 = arith.constant 0.00999999977 : f32
    %141 = vector.broadcast %cst_54 : f32 to vector<8x64xf32>
    %142 = arith.mulf %141, %138 : vector<8x64xf32>
    %143 = arith.select %140, %138, %142 : vector<8x64xi1>, vector<8x64xf32>
    %c8 = arith.constant 8 : index
    %c0_55 = arith.constant 0 : index
    %144 = vector.load %arg6[%c8, %c0_55] : memref<9x512xf32, #tpu.memory_space<vmem>>, vector<1x32xf32>
    %145 = arith.truncf %143 : vector<8x64xf32> to vector<8x64xbf16>
    %c0_56 = arith.constant 0 : index
    %c0_57 = arith.constant 0 : index
    %146 = vector.load %arg5[%c0_56, %c0_57] : memref<64x32xbf16, #tpu.memory_space<vmem>>, vector<64x32xbf16>
    %cst_58 = arith.constant dense<0.000000e+00> : vector<8x32xf32>
    %147 = tpu.matmul %145, %146, %cst_58 {dimension_numbers = #tpu.dot_dimension_numbers<[1], [0], [0], [1], [0, 0, 1, 1], [], []>} : vector<8x64xbf16>, vector<64x32xbf16>, vector<8x32xf32> -> vector<8x32xf32>
    %148 = vector.broadcast %144 : vector<1x32xf32> to vector<8x32xf32>
    %149 = arith.addf %147, %148 : vector<8x32xf32>
    %c0_59 = arith.constant 0 : index
    %c0_60 = arith.constant 0 : index
    %150 = vector.load %arg8[%c0_59, %c0_60] : memref<8x32xf32, #tpu.memory_space<vmem>>, vector<8x32xf32>
    tpu.vector_store %arg8[%c0_59, %c0_60], %149 {strides = array<i32>} : memref<8x32xf32, #tpu.memory_space<vmem>>, vector<8x32xf32>,
    return
  }
}

</mosaic_0001>

<llo_original>
// kernel: tpu_custom_call.1
$region0: #{tpu_custom_call.1}
  #allocation0 [shape = 'u32[]', space=smem, size = 0x4, offset = 0x4, fixed_abs, tag = 'smem constant byte address 0x4 - core index']
  #allocation1 [shape = 'u32[144,128]{1,0:T(1,128)}', space=vmem, size = 0x12000, scoped, tag = 'internal scratch']
  %s0 = inlined_call_operand.vmem [shape: f32[8,256], index: 0, kind: input, shape index: {}]
  %s1 = inlined_call_operand.hbm [shape: bf16[256,512], index: 1, kind: input, shape index: {}]
  %s2 = inlined_call_operand.hbm [shape: bf16[512,256], index: 2, kind: input, shape index: {}]
  %s3 = inlined_call_operand.vmem [shape: bf16[256,128], index: 3, kind: input, shape index: {}]
  %s4 = inlined_call_operand.vmem [shape: bf16[128,64], index: 4, kind: input, shape index: {}]
  %s5 = inlined_call_operand.vmem [shape: bf16[64,32], index: 5, kind: input, shape index: {}]
  %s6 = inlined_call_operand.hbm [shape: f32[9,512], index: 6, kind: input, shape index: {}]
  %s7 = inlined_call_operand.hbm [shape: f32[8,896], index: 7, kind: input, shape index: {}]
  %s8 = inlined_call_operand.hbm [shape: f32[8,32], index: 8, kind: output, shape index: {}]
  %s9 = sld [smem:[#allocation0]]
  $region58: #{tpu_custom_call.1} parent=0
    _
  %s11 = ssub.s32 1, %s9
  %s12 = scalar_select 0, %s11, %s9
  $region1: #{tpu_custom_call.1} parent=0
    #allocation2 [shape = 'u8[262144]{0}', space=vmem, size = 0x40000, scoped, tag = 'input window, operand 1, single buffered']
    #allocation3 [shape = 's32[1]{0}', space=sflag, size = 0x4, scoped, tag = 'scoped memory for tpu_custom_call.1']
    #allocation4 [shape = 's32[1]{0}', space=sflag, size = 0x4, scoped, tag = 'scoped memory for tpu_custom_call.1']
    #allocation5 [shape = 'u8[262144]{0}', space=vmem, size = 0x40000, scoped, tag = 'input window, operand 2, single buffered']
    #allocation6 [shape = 's32[1]{0}', space=sflag, size = 0x4, scoped, tag = 'scoped memory for tpu_custom_call.1']
    #allocation7 [shape = 'u8[32768]{0}', space=vmem, size = 0x8000, scoped, tag = 'input window, operand 6, single buffered']
    #allocation8 [shape = 'u8[28672]{0}', space=vmem, size = 0x7000, scoped, tag = 'input window, operand 7, single buffered']
    #allocation9 [shape = 's32[1]{0}', space=sflag, size = 0x4, scoped, tag = 'scoped memory for tpu_custom_call.1']
    #allocation10 [shape = 'u8[4096]{0}', space=vmem, size = 0x1000, scoped, tag = 'output window, operand 0, single buffered']
    %13 = vsyncpa [#allocation3], 0
    %14 = vsyncpa [#allocation6], 0
    %15 = vsyncpa [#allocation9], 0
    %16 = vsyncpa [#allocation4], 0
    // Predicated region
    $region2: #{tpu_custom_call.1} parent=1 // pred_check
      _
    $region3: #{tpu_custom_call.1} parent=1 // pred_check_branch
      %18 = sbr.rel (0) target = $region5
    $region4: #{tpu_custom_call.1} parent=1 // pred_region
      _
    $region5: #{tpu_custom_call.1} parent=1 // pred_fallthru
      _
    // Predicated region
    $region6: #{tpu_custom_call.1} parent=1 // pred_check
      _
    $region7: #{tpu_custom_call.1} parent=1 // pred_check_branch
      %20 = sbr.rel (0) target = $region9
    $region8: #{tpu_custom_call.1} parent=1 // pred_region
      %s22 = ssub.s32 8192, 8192
      %23 = vsyncadd [#allocation3], %s22
      %s24 = sshll.u32 [#allocation2], 4
      %s25 = int_to_ptr.vmem [resolvable:$true] %s24
      %30 = dma.hbm_to_vmem [thread:$0]  %s1, 8192, %s25, [#allocation3], 256, 256, 16
    $region9: #{tpu_custom_call.1} parent=1 // pred_fallthru
      _
    // Predicated region
    $region10: #{tpu_custom_call.1} parent=1 // pred_check
      _
    $region11: #{tpu_custom_call.1} parent=1 // pred_check_branch
      %32 = sbr.rel (0) target = $region13
    $region12: #{tpu_custom_call.1} parent=1 // pred_region
      %s34 = ssub.s32 8192, 8192
      %35 = vsyncadd [#allocation6], %s34
      %s36 = sshll.u32 [#allocation5], 4
      %s37 = int_to_ptr.vmem [resolvable:$true] %s36
      %42 = dma.hbm_to_vmem [thread:$0]  %s2, 8192, %s37, [#allocation6], 128, 128, 8
    $region13: #{tpu_custom_call.1} parent=1 // pred_fallthru
      _
    // Predicated region
    $region14: #{tpu_custom_call.1} parent=1 // pred_check
      _
    $region15: #{tpu_custom_call.1} parent=1 // pred_check_branch
      %44 = sbr.rel (0) target = $region17
    $region16: #{tpu_custom_call.1} parent=1 // pred_region
      _
    $region17: #{tpu_custom_call.1} parent=1 // pred_fallthru
      _
    // Predicated region
    $region18: #{tpu_custom_call.1} parent=1 // pred_check
      _
    $region19: #{tpu_custom_call.1} parent=1 // pred_check_branch
      %46 = sbr.rel (0) target = $region21
    $region20: #{tpu_custom_call.1} parent=1 // pred_region
      _
    $region21: #{tpu_custom_call.1} parent=1 // pred_fallthru
      _
    // Predicated region
    $region22: #{tpu_custom_call.1} parent=1 // pred_check
      _
    $region23: #{tpu_custom_call.1} parent=1 // pred_check_branch
      %48 = sbr.rel (0) target = $region25
    $region24: #{tpu_custom_call.1} parent=1 // pred_region
      _
    $region25: #{tpu_custom_call.1} parent=1 // pred_fallthru
      _
    // Predicated region
    $region26: #{tpu_custom_call.1} parent=1 // pred_check
      _
    $region27: #{tpu_custom_call.1} parent=1 // pred_check_branch
      %50 = sbr.rel (0) target = $region29
    $region28: #{tpu_custom_call.1} parent=1 // pred_region
      %s52 = ssub.s32 1024, 1024
      %53 = vsyncadd [#allocation6], %s52
      %s54 = sshll.u32 [#allocation7], 4
      %s55 = int_to_ptr.vmem [resolvable:$true] %s54
      %60 = dma.hbm_to_vmem [thread:$0]  %s6, 1024, %s55, [#allocation6], 512, 512, 32
    $region29: #{tpu_custom_call.1} parent=1 // pred_fallthru
      _
    // Predicated region
    $region30: #{tpu_custom_call.1} parent=1 // pred_check
      _
    $region31: #{tpu_custom_call.1} parent=1 // pred_check_branch
      %62 = sbr.rel (0) target = $region33
    $region32: #{tpu_custom_call.1} parent=1 // pred_region
      %s64 = ssub.s32 896, 896
      %65 = vsyncadd [#allocation9], %s64
      %s67 = sshll.u32 [#allocation8], 4
      %s68 = int_to_ptr.vmem [resolvable:$true] %s67
      %70 = dma.hbm_to_vmem [thread:$0]  %s7, 896, %s68, [#allocation9]
    $region33: #{tpu_custom_call.1} parent=1 // pred_fallthru
      _
    // Predicated region
    $region34: #{tpu_custom_call.1} parent=1 // pred_check
      _
    $region35: #{tpu_custom_call.1} parent=1 // pred_check_branch
      %72 = sbr.rel (0) target = $region37
    $region36: #{tpu_custom_call.1} parent=1 // pred_region
      %73 = dma.done [#allocation3], 8192
    $region37: #{tpu_custom_call.1} parent=1 // pred_fallthru
      _
    // Predicated region
    $region38: #{tpu_custom_call.1} parent=1 // pred_check
      _
    $region39: #{tpu_custom_call.1} parent=1 // pred_check_branch
      %75 = sbr.rel (0) target = $region41
    $region40: #{tpu_custom_call.1} parent=1 // pred_region
      %76 = dma.done [#allocation6], 8192
    $region41: #{tpu_custom_call.1} parent=1 // pred_fallthru
      _
    // Predicated region
    $region42: #{tpu_custom_call.1} parent=1 // pred_check
      _
    $region43: #{tpu_custom_call.1} parent=1 // pred_check_branch
      %78 = sbr.rel (0) target = $region45
    $region44: #{tpu_custom_call.1} parent=1 // pred_region
      %79 = dma.done [#allocation6], 1024
    $region45: #{tpu_custom_call.1} parent=1 // pred_fallthru
      _
    // Predicated region
    $region46: #{tpu_custom_call.1} parent=1 // pred_check
      _
    $region47: #{tpu_custom_call.1} parent=1 // pred_check_branch
      %81 = sbr.rel (0) target = $region49
    $region48: #{tpu_custom_call.1} parent=1 // pred_region
      %82 = dma.done [#allocation9], 896
    $region49: #{tpu_custom_call.1} parent=1 // pred_fallthru
      _
    %v84 = vld [vmem:[%s0] sm:$0xff]
    %v85 = vld [vmem:[%s0 + $0x8] sm:$0xff]
    %v86 = vld [vmem:[#allocation8] sm:$0xff]
    %v87 = vld [vmem:[#allocation8 + $0x8] sm:$0xff]
    %v88 = vld [vmem:[#allocation8 + $0x10] sm:$0xff]
    %v89 = vld [vmem:[#allocation8 + $0x18] sm:$0xff]
    %v90 = vld [vmem:[#allocation8 + $0x20] sm:$0xff]
    %v91 = vld [vmem:[#allocation8 + $0x28] sm:$0xff]
    %v92 = vld [vmem:[#allocation8 + $0x30] sm:$0xff]
    %v93 = vpack.c.bf16 %v84, %v84
    %v94 = vpack.c.bf16 %v85, %v85
    %v95 = vld [vmem:[#allocation2] sm:$0xff]
    %v96 = vld [vmem:[#allocation2 + $0x8] sm:$0xff]
    %v97 = vld [vmem:[#allocation2 + $0x10] sm:$0xff]
    %v98 = vld [vmem:[#allocation2 + $0x18] sm:$0xff]
    %v99 = vld [vmem:[#allocation2 + $0x20] sm:$0xff]
    %v100 = vld [vmem:[#allocation2 + $0x28] sm:$0xff]
    %v101 = vld [vmem:[#allocation2 + $0x30] sm:$0xff]
    %v102 = vld [vmem:[#allocation2 + $0x38] sm:$0xff]
    %v103 = vld [vmem:[#allocation2 + $0x40] sm:$0xff]
    %v104 = vld [vmem:[#allocation2 + $0x48] sm:$0xff]
    %v105 = vld [vmem:[#allocation2 + $0x50] sm:$0xff]
    %v106 = vld [vmem:[#allocation2 + $0x58] sm:$0xff]
    %v107 = vld [vmem:[#allocation2 + $0x60] sm:$0xff]
    %v108 = vld [vmem:[#allocation2 + $0x68] sm:$0xff]
    %v109 = vld [vmem:[#allocation2 + $0x70] sm:$0xff]
    %v110 = vld [vmem:[#allocation2 + $0x78] sm:$0xff]
    %v111 = vld [vmem:[#allocation2 + $0x80] sm:$0xff]
    %v112 = vld [vmem:[#allocation2 + $0x88] sm:$0xff]
    %v113 = vld [vmem:[#allocation2 + $0x90] sm:$0xff]
    %v114 = vld [vmem:[#allocation2 + $0x98] sm:$0xff]
    %v115 = vld [vmem:[#allocation2 + $0xa0] sm:$0xff]
    %v116 = vld [vmem:[#allocation2 + $0xa8] sm:$0xff]
    %v117 = vld [vmem:[#allocation2 + $0xb0] sm:$0xff]
    %v118 = vld [vmem:[#allocation2 + $0xb8] sm:$0xff]
    %v119 = vld [vmem:[#allocation2 + $0xc0] sm:$0xff]
    %v120 = vld [vmem:[#allocation2 + $0xc8] sm:$0xff]
    %v121 = vld [vmem:[#allocation2 + $0xd0] sm:$0xff]
    %v122 = vld [vmem:[#allocation2 + $0xd8] sm:$0xff]
    %v123 = vld [vmem:[#allocation2 + $0xe0] sm:$0xff]
    %v124 = vld [vmem:[#allocation2 + $0xe8] sm:$0xff]
    %v125 = vld [vmem:[#allocation2 + $0xf0] sm:$0xff]
    %v126 = vld [vmem:[#allocation2 + $0xf8] sm:$0xff]
    %v127 = vld [vmem:[#allocation2 + $0x100] sm:$0xff]
    %v128 = vld [vmem:[#allocation2 + $0x108] sm:$0xff]
    %v129 = vld [vmem:[#allocation2 + $0x110] sm:$0xff]
    %v130 = vld [vmem:[#allocation2 + $0x118] sm:$0xff]
    %v131 = vld [vmem:[#allocation2 + $0x120] sm:$0xff]
    %v132 = vld [vmem:[#allocation2 + $0x128] sm:$0xff]
    %v133 = vld [vmem:[#allocation2 + $0x130] sm:$0xff]
    %v134 = vld [vmem:[#allocation2 + $0x138] sm:$0xff]
    %v135 = vld [vmem:[#allocation2 + $0x140] sm:$0xff]
    %v136 = vld [vmem:[#allocation2 + $0x148] sm:$0xff]
    %v137 = vld [vmem:[#allocation2 + $0x150] sm:$0xff]
    %v138 = vld [vmem:[#allocation2 + $0x158] sm:$0xff]
    %v139 = vld [vmem:[#allocation2 + $0x160] sm:$0xff]
    %v140 = vld [vmem:[#allocation2 + $0x168] sm:$0xff]
    %v141 = vld [vmem:[#allocation2 + $0x170] sm:$0xff]
    %v142 = vld [vmem:[#allocation2 + $0x178] sm:$0xff]
    %v143 = vld [vmem:[#allocation2 + $0x180] sm:$0xff]
    %v144 = vld [vmem:[#allocation2 + $0x188] sm:$0xff]
    %v145 = vld [vmem:[#allocation2 + $0x190] sm:$0xff]
    %v146 = vld [vmem:[#allocation2 + $0x198] sm:$0xff]
    %v147 = vld [vmem:[#allocation2 + $0x1a0] sm:$0xff]
    %v148 = vld [vmem:[#allocation2 + $0x1a8] sm:$0xff]
    %v149 = vld [vmem:[#allocation2 + $0x1b0] sm:$0xff]
    %v150 = vld [vmem:[#allocation2 + $0x1b8] sm:$0xff]
    %v151 = vld [vmem:[#allocation2 + $0x1c0] sm:$0xff]
    %v152 = vld [vmem:[#allocation2 + $0x1c8] sm:$0xff]
    %v153 = vld [vmem:[#allocation2 + $0x1d0] sm:$0xff]
    %v154 = vld [vmem:[#allocation2 + $0x1d8] sm:$0xff]
    %v155 = vld [vmem:[#allocation2 + $0x1e0] sm:$0xff]
    %v156 = vld [vmem:[#allocation2 + $0x1e8] sm:$0xff]
    %v157 = vld [vmem:[#allocation2 + $0x1f0] sm:$0xff]
    %v158 = vld [vmem:[#allocation2 + $0x1f8] sm:$0xff]
    %v223 = vunpack.c.l.b16 %v95
    %v224 = vunpack.c.h.b16 %v95
    %v225 = vunpack.c.l.b16 %v96
    %v226 = vunpack.c.h.b16 %v96
    %v227 = vunpack.c.l.b16 %v97
    %v228 = vunpack.c.h.b16 %v97
    %v229 = vunpack.c.l.b16 %v98
    %v230 = vunpack.c.h.b16 %v98
    %v231 = vunpack.c.l.b16 %v99
    %v232 = vunpack.c.h.b16 %v99
    %v233 = vunpack.c.l.b16 %v100
    %v234 = vunpack.c.h.b16 %v100
    %v235 = vunpack.c.l.b16 %v101
    %v236 = vunpack.c.h.b16 %v101
    %v237 = vunpack.c.l.b16 %v102
    %v238 = vunpack.c.h.b16 %v102
    %v239 = vunpack.c.l.b16 %v103
    %v240 = vunpack.c.h.b16 %v103
    %v241 = vunpack.c.l.b16 %v104
    %v242 = vunpack.c.h.b16 %v104
    %v243 = vunpack.c.l.b16 %v105
    %v244 = vunpack.c.h.b16 %v105
    %v245 = vunpack.c.l.b16 %v106
    %v246 = vunpack.c.h.b16 %v106
    %v247 = vunpack.c.l.b16 %v107
    %v248 = vunpack.c.h.b16 %v107
    %v249 = vunpack.c.l.b16 %v108
    %v250 = vunpack.c.h.b16 %v108
    %v251 = vunpack.c.l.b16 %v109
    %v252 = vunpack.c.h.b16 %v109
    %v253 = vunpack.c.l.b16 %v110
    %v254 = vunpack.c.h.b16 %v110
    %v255 = vunpack.c.l.b16 %v111
    %v256 = vunpack.c.h.b16 %v111
    %v257 = vunpack.c.l.b16 %v112
    %v258 = vunpack.c.h.b16 %v112
    %v259 = vunpack.c.l.b16 %v113
    %v260 = vunpack.c.h.b16 %v113
    %v261 = vunpack.c.l.b16 %v114
    %v262 = vunpack.c.h.b16 %v114
    %v263 = vunpack.c.l.b16 %v115
    %v264 = vunpack.c.h.b16 %v115
    %v265 = vunpack.c.l.b16 %v116
    %v266 = vunpack.c.h.b16 %v116
    %v267 = vunpack.c.l.b16 %v117
    %v268 = vunpack.c.h.b16 %v117
    %v269 = vunpack.c.l.b16 %v118
    %v270 = vunpack.c.h.b16 %v118
    %v271 = vunpack.c.l.b16 %v119
    %v272 = vunpack.c.h.b16 %v119
    %v273 = vunpack.c.l.b16 %v120
    %v274 = vunpack.c.h.b16 %v120
    %v275 = vunpack.c.l.b16 %v121
    %v276 = vunpack.c.h.b16 %v121
    %v277 = vunpack.c.l.b16 %v122
    %v278 = vunpack.c.h.b16 %v122
    %v279 = vunpack.c.l.b16 %v123
    %v280 = vunpack.c.h.b16 %v123
    %v281 = vunpack.c.l.b16 %v124
    %v282 = vunpack.c.h.b16 %v124
    %v283 = vunpack.c.l.b16 %v125
    %v284 = vunpack.c.h.b16 %v125
    %v285 = vunpack.c.l.b16 %v126
    %v286 = vunpack.c.h.b16 %v126
    %v287 = vunpack.c.l.b16 %v127
    %v288 = vunpack.c.h.b16 %v127
    %v289 = vunpack.c.l.b16 %v128
    %v290 = vunpack.c.h.b16 %v128
    %v291 = vunpack.c.l.b16 %v129
    %v292 = vunpack.c.h.b16 %v129
    %v293 = vunpack.c.l.b16 %v130
    %v294 = vunpack.c.h.b16 %v130
    %v295 = vunpack.c.l.b16 %v131
    %v296 = vunpack.c.h.b16 %v131
    %v297 = vunpack.c.l.b16 %v132
    %v298 = vunpack.c.h.b16 %v132
    %v299 = vunpack.c.l.b16 %v133
    %v300 = vunpack.c.h.b16 %v133
    %v301 = vunpack.c.l.b16 %v134
    %v302 = vunpack.c.h.b16 %v134
    %v303 = vunpack.c.l.b16 %v135
    %v304 = vunpack.c.h.b16 %v135
    %v305 = vunpack.c.l.b16 %v136
    %v306 = vunpack.c.h.b16 %v136
    %v307 = vunpack.c.l.b16 %v137
    %v308 = vunpack.c.h.b16 %v137
    %v309 = vunpack.c.l.b16 %v138
    %v310 = vunpack.c.h.b16 %v138
    %v311 = vunpack.c.l.b16 %v139
    %v312 = vunpack.c.h.b16 %v139
    %v313 = vunpack.c.l.b16 %v140
    %v314 = vunpack.c.h.b16 %v140
    %v315 = vunpack.c.l.b16 %v141
    %v316 = vunpack.c.h.b16 %v141
    %v317 = vunpack.c.l.b16 %v142
    %v318 = vunpack.c.h.b16 %v142
    %v319 = vunpack.c.l.b16 %v143
    %v320 = vunpack.c.h.b16 %v143
    %v321 = vunpack.c.l.b16 %v144
    %v322 = vunpack.c.h.b16 %v144
    %v323 = vunpack.c.l.b16 %v145
    %v324 = vunpack.c.h.b16 %v145
    %v325 = vunpack.c.l.b16 %v146
    %v326 = vunpack.c.h.b16 %v146
    %v327 = vunpack.c.l.b16 %v147
    %v328 = vunpack.c.h.b16 %v147
    %v329 = vunpack.c.l.b16 %v148
    %v330 = vunpack.c.h.b16 %v148
    %v331 = vunpack.c.l.b16 %v149
    %v332 = vunpack.c.h.b16 %v149
    %v333 = vunpack.c.l.b16 %v150
    %v334 = vunpack.c.h.b16 %v150
    %v335 = vunpack.c.l.b16 %v151
    %v336 = vunpack.c.h.b16 %v151
    %v337 = vunpack.c.l.b16 %v152
    %v338 = vunpack.c.h.b16 %v152
    %v339 = vunpack.c.l.b16 %v153
    %v340 = vunpack.c.h.b16 %v153
    %v341 = vunpack.c.l.b16 %v154
    %v342 = vunpack.c.h.b16 %v154
    %v343 = vunpack.c.l.b16 %v155
    %v344 = vunpack.c.h.b16 %v155
    %v345 = vunpack.c.l.b16 %v156
    %v346 = vunpack.c.h.b16 %v156
    %v347 = vunpack.c.l.b16 %v157
    %v348 = vunpack.c.h.b16 %v157
    %v349 = vunpack.c.l.b16 %v158
    %v350 = vunpack.c.h.b16 %v158
    %v351 = vpack.c.b16 %v227, %v223
    %v352 = vpack.c.b16 %v228, %v224
    %v353 = vpack.c.b16 %v229, %v225
    %v354 = vpack.c.b16 %v230, %v226
    %v355 = vpack.c.b16 %v235, %v231
    %v356 = vpack.c.b16 %v236, %v232
    %v357 = vpack.c.b16 %v237, %v233
    %v358 = vpack.c.b16 %v238, %v234
    %v359 = vpack.c.b16 %v243, %v239
    %v360 = vpack.c.b16 %v244, %v240
    %v361 = vpack.c.b16 %v245, %v241
    %v362 = vpack.c.b16 %v246, %v242
    %v363 = vpack.c.b16 %v251, %v247
    %v364 = vpack.c.b16 %v252, %v248
    %v365 = vpack.c.b16 %v253, %v249
    %v366 = vpack.c.b16 %v254, %v250
    %v367 = vpack.c.b16 %v259, %v255
    %v368 = vpack.c.b16 %v260, %v256
    %v369 = vpack.c.b16 %v261, %v257
    %v370 = vpack.c.b16 %v262, %v258
    %v371 = vpack.c.b16 %v267, %v263
    %v372 = vpack.c.b16 %v268, %v264
    %v373 = vpack.c.b16 %v269, %v265
    %v374 = vpack.c.b16 %v270, %v266
    %v375 = vpack.c.b16 %v275, %v271
    %v376 = vpack.c.b16 %v276, %v272
    %v377 = vpack.c.b16 %v277, %v273
    %v378 = vpack.c.b16 %v278, %v274
    %v379 = vpack.c.b16 %v283, %v279
    %v380 = vpack.c.b16 %v284, %v280
    %v381 = vpack.c.b16 %v285, %v281
    %v382 = vpack.c.b16 %v286, %v282
    %v383 = vpack.c.b16 %v291, %v287
    %v384 = vpack.c.b16 %v292, %v288
    %v385 = vpack.c.b16 %v293, %v289
    %v386 = vpack.c.b16 %v294, %v290
    %v387 = vpack.c.b16 %v299, %v295
    %v388 = vpack.c.b16 %v300, %v296
    %v389 = vpack.c.b16 %v301, %v297
    %v390 = vpack.c.b16 %v302, %v298
    %v391 = vpack.c.b16 %v307, %v303
    %v392 = vpack.c.b16 %v308, %v304
    %v393 = vpack.c.b16 %v309, %v305
    %v394 = vpack.c.b16 %v310, %v306
    %v395 = vpack.c.b16 %v315, %v311
    %v396 = vpack.c.b16 %v316, %v312
    %v397 = vpack.c.b16 %v317, %v313
    %v398 = vpack.c.b16 %v318, %v314
    %v399 = vpack.c.b16 %v323, %v319
    %v400 = vpack.c.b16 %v324, %v320
    %v401 = vpack.c.b16 %v325, %v321
    %v402 = vpack.c.b16 %v326, %v322
    %v403 = vpack.c.b16 %v331, %v327
    %v404 = vpack.c.b16 %v332, %v328
    %v405 = vpack.c.b16 %v333, %v329
    %v406 = vpack.c.b16 %v334, %v330
    %v407 = vpack.c.b16 %v339, %v335
    %v408 = vpack.c.b16 %v340, %v336
    %v409 = vpack.c.b16 %v341, %v337
    %v410 = vpack.c.b16 %v342, %v338
    %v411 = vpack.c.b16 %v347, %v343
    %v412 = vpack.c.b16 %v348, %v344
    %v413 = vpack.c.b16 %v349, %v345
    %v414 = vpack.c.b16 %v350, %v346
    %479 = vmatprep.subr.bf16.mxu0 %v380
    %480 = vmatpush1.bf16.msra.mxu0 %v379
    %481 = vmatprep.subr.bf16.mxu0 %v376
    %482 = vmatpush1.bf16.msra.mxu0 %v375
    %483 = vmatprep.subr.bf16.mxu0 %v372
    %484 = vmatpush1.bf16.msra.mxu0 %v371
    %485 = vmatprep.subr.bf16.mxu0 %v368
    %486 = vmatpush1.bf16.msra.mxu0 %v367
    %487 = vmatprep.subr.bf16.mxu0 %v364
    %488 = vmatpush1.bf16.msra.mxu0 %v363
    %489 = vmatprep.subr.bf16.mxu0 %v360
    %490 = vmatpush1.bf16.msra.mxu0 %v359
    %491 = vmatprep.subr.bf16.mxu0 %v356
    %492 = vmatpush1.bf16.msra.mxu0 %v355
    %493 = vmatprep.subr.bf16.mxu0 %v352
    %494 = vmatpush1.bf16.msra.mxu0 %v351
    %495 = vmatprep.subr.bf16.mxu0 %v412
    %496 = vmatpush2.bf16.msra.mxu0 %v411
    %497 = vmatprep.subr.bf16.mxu0 %v408
    %498 = vmatpush2.bf16.msra.mxu0 %v407
    %499 = vmatprep.subr.bf16.mxu0 %v404
    %500 = vmatpush2.bf16.msra.mxu0 %v403
    %501 = vmatprep.subr.bf16.mxu0 %v400
    %502 = vmatpush2.bf16.msra.mxu0 %v399
    %503 = vmatprep.subr.bf16.mxu0 %v396
    %504 = vmatpush2.bf16.msra.mxu0 %v395
    %505 = vmatprep.subr.bf16.mxu0 %v392
    %506 = vmatpush2.bf16.msra.mxu0 %v391
    %507 = vmatprep.subr.bf16.mxu0 %v388
    %508 = vmatpush2.bf16.msra.mxu0 %v387
    %509 = vmatprep.subr.bf16.mxu0 %v384
    %510 = vmatpush2.bf16.msra.mxu0 %v383
    %511 = vmatprep.mubr.bf16.mxu0 %v94
    %512 = vmatmul.mubr.bf16.gmra.mxu0 %v93
    %v513 = vpop.f32.mrf.mxu0
    %v514 = vadd.f32 0.0, %v513
    %v515 = vpop.f32.mrf.mxu0
    %v516 = vadd.f32 0.0, %v515
    %v517 = vpop.f32.mrf.mxu0
    %v518 = vpop.f32.mrf.mxu0
    %519 = vdwg.mxu0
    %520 = vmatprep.subr.bf16.mxu0 %v382
    %521 = vmatpush1.bf16.msra.mxu0 %v381
    %522 = vmatprep.subr.bf16.mxu0 %v378
    %523 = vmatpush1.bf16.msra.mxu0 %v377
    %524 = vmatprep.subr.bf16.mxu0 %v374
    %525 = vmatpush1.bf16.msra.mxu0 %v373
    %526 = vmatprep.subr.bf16.mxu0 %v370
    %527 = vmatpush1.bf16.msra.mxu0 %v369
    %528 = vmatprep.subr.bf16.mxu0 %v366
    %529 = vmatpush1.bf16.msra.mxu0 %v365
    %530 = vmatprep.subr.bf16.mxu0 %v362
    %531 = vmatpush1.bf16.msra.mxu0 %v361
    %532 = vmatprep.subr.bf16.mxu0 %v358
    %533 = vmatpush1.bf16.msra.mxu0 %v357
    %534 = vmatprep.subr.bf16.mxu0 %v354
    %535 = vmatpush1.bf16.msra.mxu0 %v353
    %536 = vmatprep.subr.bf16.mxu0 %v414
    %537 = vmatpush2.bf16.msra.mxu0 %v413
    %538 = vmatprep.subr.bf16.mxu0 %v410
    %539 = vmatpush2.bf16.msra.mxu0 %v409
    %540 = vmatprep.subr.bf16.mxu0 %v406
    %541 = vmatpush2.bf16.msra.mxu0 %v405
    %542 = vmatprep.subr.bf16.mxu0 %v402
    %543 = vmatpush2.bf16.msra.mxu0 %v401
    %544 = vmatprep.subr.bf16.mxu0 %v398
    %545 = vmatpush2.bf16.msra.mxu0 %v397
    %546 = vmatprep.subr.bf16.mxu0 %v394
    %547 = vmatpush2.bf16.msra.mxu0 %v393
    %548 = vmatprep.subr.bf16.mxu0 %v390
    %549 = vmatpush2.bf16.msra.mxu0 %v389
    %550 = vmatprep.subr.bf16.mxu0 %v386
    %551 = vmatpush2.bf16.msra.mxu0 %v385
    %552 = vmatprep.mubr.bf16.mxu0 %v94
    %553 = vmatmul.mubr.bf16.gmra.mxu0 %v93
    %v554 = vpop.f32.mrf.mxu0
    %v555 = vadd.f32 0.0, %v554
    %v556 = vpop.f32.mrf.mxu0
    %v557 = vadd.f32 0.0, %v556
    %v558 = vpop.f32.mrf.mxu0
    %v559 = vpop.f32.mrf.mxu0
    %560 = vdwg.mxu0
    %v561 = vrot.slane %v514, 4
    %v562 = vadd.f32 %v514, %v561
    %v563 = vrot.slane %v562, 2
    %v564 = vadd.f32 %v562, %v563
    %v565 = vrot.slane %v564, 1
    %v566 = vadd.f32 %v564, %v565
    %v567 = vrot.slane %v516, 4
    %v568 = vadd.f32 %v516, %v567
    %v569 = vrot.slane %v568, 2
    %v570 = vadd.f32 %v568, %v569
    %v571 = vrot.slane %v570, 1
    %v572 = vadd.f32 %v570, %v571
    %v573 = vrot.slane %v555, 4
    %v574 = vadd.f32 %v555, %v573
    %v575 = vrot.slane %v574, 2
    %v576 = vadd.f32 %v574, %v575
    %v577 = vrot.slane %v576, 1
    %v578 = vadd.f32 %v576, %v577
    %v579 = vrot.slane %v557, 4
    %v580 = vadd.f32 %v557, %v579
    %v581 = vrot.slane %v580, 2
    %v582 = vadd.f32 %v580, %v581
    %v583 = vrot.slane %v582, 1
    %v584 = vadd.f32 %v582, %v583
    %v585 = vmul.f32 %v514, %v514
    %v586 = vmul.f32 %v516, %v516
    %v587 = vmul.f32 %v555, %v555
    %v588 = vmul.f32 %v557, %v557
    %v589 = vrot.slane %v585, 4
    %v590 = vadd.f32 %v585, %v589
    %v591 = vrot.slane %v590, 2
    %v592 = vadd.f32 %v590, %v591
    %v593 = vrot.slane %v592, 1
    %v594 = vadd.f32 %v592, %v593
    %v595 = vrot.slane %v586, 4
    %v596 = vadd.f32 %v586, %v595
    %v597 = vrot.slane %v596, 2
    %v598 = vadd.f32 %v596, %v597
    %v599 = vrot.slane %v598, 1
    %v600 = vadd.f32 %v598, %v599
    %v601 = vrot.slane %v587, 4
    %v602 = vadd.f32 %v587, %v601
    %v603 = vrot.slane %v602, 2
    %v604 = vadd.f32 %v602, %v603
    %v605 = vrot.slane %v604, 1
    %v606 = vadd.f32 %v604, %v605
    %v607 = vrot.slane %v588, 4
    %v608 = vadd.f32 %v588, %v607
    %v609 = vrot.slane %v608, 2
    %v610 = vadd.f32 %v608, %v609
    %v611 = vrot.slane %v610, 1
    %v612 = vadd.f32 %v610, %v611
    %v613 = vmul.f32 %v566, 0.125
    %v614 = vmul.f32 %v572, 0.125
    %v615 = vmul.f32 %v578, 0.125
    %v616 = vmul.f32 %v584, 0.125
    %v617 = vmul.f32 %v594, 0.125
    %v618 = vmul.f32 %v600, 0.125
    %v619 = vmul.f32 %v606, 0.125
    %v620 = vmul.f32 %v612, 0.125
    %v621 = vmul.f32 %v613, %v613
    %v622 = vmul.f32 %v614, %v614
    %v623 = vmul.f32 %v615, %v615
    %v624 = vmul.f32 %v616, %v616
    %v625 = vsub.f32 %v617, %v621
    %v626 = vsub.f32 %v618, %v622
    %v627 = vsub.f32 %v619, %v623
    %v628 = vsub.f32 %v620, %v624
    %v629 = vmax.f32 %v625, 0.0
    %v630 = vmax.f32 %v626, 0.0
    %v631 = vmax.f32 %v627, 0.0
    %v632 = vmax.f32 %v628, 0.0
    %v633 = vld [vmem:[#allocation7] ss:$8 sm:$0xf]
    %s634 = scalar_lea.vmem [#allocation7], 1
    %v635 = vld [vmem:[%s634] ss:$8 sm:$0xf]
    %v636 = vsub.f32 %v514, %v613
    %v637 = vsub.f32 %v516, %v614
    %v638 = vsub.f32 %v555, %v615
    %v639 = vsub.f32 %v557, %v616
    %v640 = vadd.f32 %v629, 1e-05
    %v641 = vadd.f32 %v630, 1e-05
    %v642 = vadd.f32 %v631, 1e-05
    %v643 = vadd.f32 %v632, 1e-05
    %v644 = vrsqrt.pop %v640
    %v645 = vrsqrt.pop %v641
    %v646 = vrsqrt.pop %v642
    %v647 = vrsqrt.pop %v643
    %v648 = vmul.f32 %v636, %v644
    %v649 = vmul.f32 %v637, %v645
    %v650 = vmul.f32 %v638, %v646
    %v651 = vmul.f32 %v639, %v647
    %v653 = vlaneseq
    %v654 = vshrl.u32 %v653, 7
    %v655 = vsub.s32 0, %v654
    %v656 = vrot.slane %v633, %v655
    %v657 = vlaneseq
    %v658 = vshrl.u32 %v657, 7
    %v659 = vsub.s32 1, %v658
    %v660 = vrot.slane %v633, %v659
    %v661 = vlaneseq
    %v662 = vshrl.u32 %v661, 7
    %v663 = vsub.s32 2, %v662
    %v664 = vrot.slane %v633, %v663
    %v665 = vlaneseq
    %v666 = vshrl.u32 %v665, 7
    %v667 = vsub.s32 3, %v666
    %v668 = vrot.slane %v633, %v667
    %v673 = vmul.f32 %v648, %v656
    %v674 = vmul.f32 %v649, %v660
    %v675 = vmul.f32 %v650, %v664
    %v676 = vmul.f32 %v651, %v668
    %v678 = vlaneseq
    %v679 = vshrl.u32 %v678, 7
    %v680 = vsub.s32 0, %v679
    %v681 = vrot.slane %v635, %v680
    %v682 = vlaneseq
    %v683 = vshrl.u32 %v682, 7
    %v684 = vsub.s32 1, %v683
    %v685 = vrot.slane %v635, %v684
    %v686 = vlaneseq
    %v687 = vshrl.u32 %v686, 7
    %v688 = vsub.s32 2, %v687
    %v689 = vrot.slane %v635, %v688
    %v690 = vlaneseq
    %v691 = vshrl.u32 %v690, 7
    %v692 = vsub.s32 3, %v691
    %v693 = vrot.slane %v635, %v692
    %v698 = vadd.f32 %v673, %v681
    %v699 = vadd.f32 %v674, %v685
    %v700 = vadd.f32 %v675, %v689
    %v701 = vadd.f32 %v676, %v693
    %vm702 = vcmp.gt.f32.partialorder %v698, 0.0
    %vm703 = vcmp.gt.f32.partialorder %v699, 0.0
    %vm704 = vcmp.gt.f32.partialorder %v700, 0.0
    %vm705 = vcmp.gt.f32.partialorder %v701, 0.0
    %v706 = vmul.f32 %v698, 0.01
    %v707 = vmul.f32 %v699, 0.01
    %v708 = vmul.f32 %v700, 0.01
    %v709 = vmul.f32 %v701, 0.01
    %v710 = vsel %vm702, %v698, %v706
    %v711 = vsel %vm703, %v699, %v707
    %v712 = vsel %vm704, %v700, %v708
    %v713 = vsel %vm705, %v701, %v709
    %v714 = vmul.f32 %v710, %v86
    %v715 = vmul.f32 %v711, %v87
    %v716 = vmul.f32 %v712, %v88
    %v717 = vmul.f32 %v713, %v89
    %v718 = vpack.c.bf16 %v714, %v714
    %v719 = vpack.c.bf16 %v715, %v715
    %v720 = vpack.c.bf16 %v716, %v716
    %v721 = vpack.c.bf16 %v717, %v717
    %v722 = vld [vmem:[#allocation5] sm:$0xff]
    %v723 = vld [vmem:[#allocation5 + $0x8] sm:$0xff]
    %v724 = vld [vmem:[#allocation5 + $0x10] sm:$0xff]
    %v725 = vld [vmem:[#allocation5 + $0x18] sm:$0xff]
    %v726 = vld [vmem:[#allocation5 + $0x20] sm:$0xff]
    %v727 = vld [vmem:[#allocation5 + $0x28] sm:$0xff]
    %v728 = vld [vmem:[#allocation5 + $0x30] sm:$0xff]
    %v729 = vld [vmem:[#allocation5 + $0x38] sm:$0xff]
    %v730 = vld [vmem:[#allocation5 + $0x40] sm:$0xff]
    %v731 = vld [vmem:[#allocation5 + $0x48] sm:$0xff]
    %v732 = vld [vmem:[#allocation5 + $0x50] sm:$0xff]
    %v733 = vld [vmem:[#allocation5 + $0x58] sm:$0xff]
    %v734 = vld [vmem:[#allocation5 + $0x60] sm:$0xff]
    %v735 = vld [vmem:[#allocation5 + $0x68] sm:$0xff]
    %v736 = vld [vmem:[#allocation5 + $0x70] sm:$0xff]
    %v737 = vld [vmem:[#allocation5 + $0x78] sm:$0xff]
    %v738 = vld [vmem:[#allocation5 + $0x80] sm:$0xff]
    %v739 = vld [vmem:[#allocation5 + $0x88] sm:$0xff]
    %v740 = vld [vmem:[#allocation5 + $0x90] sm:$0xff]
    %v741 = vld [vmem:[#allocation5 + $0x98] sm:$0xff]
    %v742 = vld [vmem:[#allocation5 + $0xa0] sm:$0xff]
    %v743 = vld [vmem:[#allocation5 + $0xa8] sm:$0xff]
    %v744 = vld [vmem:[#allocation5 + $0xb0] sm:$0xff]
    %v745 = vld [vmem:[#allocation5 + $0xb8] sm:$0xff]
    %v746 = vld [vmem:[#allocation5 + $0xc0] sm:$0xff]
    %v747 = vld [vmem:[#allocation5 + $0xc8] sm:$0xff]
    %v748 = vld [vmem:[#allocation5 + $0xd0] sm:$0xff]
    %v749 = vld [vmem:[#allocation5 + $0xd8] sm:$0xff]
    %v750 = vld [vmem:[#allocation5 + $0xe0] sm:$0xff]
    %v751 = vld [vmem:[#allocation5 + $0xe8] sm:$0xff]
    %v752 = vld [vmem:[#allocation5 + $0xf0] sm:$0xff]
    %v753 = vld [vmem:[#allocation5 + $0xf8] sm:$0xff]
    %v754 = vld [vmem:[#allocation5 + $0x100] sm:$0xff]
    %v755 = vld [vmem:[#allocation5 + $0x108] sm:$0xff]
    %v756 = vld [vmem:[#allocation5 + $0x110] sm:$0xff]
    %v757 = vld [vmem:[#allocation5 + $0x118] sm:$0xff]
    %v758 = vld [vmem:[#allocation5 + $0x120] sm:$0xff]
    %v759 = vld [vmem:[#allocation5 + $0x128] sm:$0xff]
    %v760 = vld [vmem:[#allocation5 + $0x130] sm:$0xff]
    %v761 = vld [vmem:[#allocation5 + $0x138] sm:$0xff]
    %v762 = vld [vmem:[#allocation5 + $0x140] sm:$0xff]
    %v763 = vld [vmem:[#allocation5 + $0x148] sm:$0xff]
    %v764 = vld [vmem:[#allocation5 + $0x150] sm:$0xff]
    %v765 = vld [vmem:[#allocation5 + $0x158] sm:$0xff]
    %v766 = vld [vmem:[#allocation5 + $0x160] sm:$0xff]
    %v767 = vld [vmem:[#allocation5 + $0x168] sm:$0xff]
    %v768 = vld [vmem:[#allocation5 + $0x170] sm:$0xff]
    %v769 = vld [vmem:[#allocation5 + $0x178] sm:$0xff]
    %v770 = vld [vmem:[#allocation5 + $0x180] sm:$0xff]
    %v771 = vld [vmem:[#allocation5 + $0x188] sm:$0xff]
    %v772 = vld [vmem:[#allocation5 + $0x190] sm:$0xff]
    %v773 = vld [vmem:[#allocation5 + $0x198] sm:$0xff]
    %v774 = vld [vmem:[#allocation5 + $0x1a0] sm:$0xff]
    %v775 = vld [vmem:[#allocation5 + $0x1a8] sm:$0xff]
    %v776 = vld [vmem:[#allocation5 + $0x1b0] sm:$0xff]
    %v777 = vld [vmem:[#allocation5 + $0x1b8] sm:$0xff]
    %v778 = vld [vmem:[#allocation5 + $0x1c0] sm:$0xff]
    %v779 = vld [vmem:[#allocation5 + $0x1c8] sm:$0xff]
    %v780 = vld [vmem:[#allocation5 + $0x1d0] sm:$0xff]
    %v781 = vld [vmem:[#allocation5 + $0x1d8] sm:$0xff]
    %v782 = vld [vmem:[#allocation5 + $0x1e0] sm:$0xff]
    %v783 = vld [vmem:[#allocation5 + $0x1e8] sm:$0xff]
    %v784 = vld [vmem:[#allocation5 + $0x1f0] sm:$0xff]
    %v785 = vld [vmem:[#allocation5 + $0x1f8] sm:$0xff]
    %v850 = vunpack.c.l.b16 %v722
    %v851 = vunpack.c.h.b16 %v722
    %v852 = vunpack.c.l.b16 %v723
    %v853 = vunpack.c.h.b16 %v723
    %v854 = vunpack.c.l.b16 %v724
    %v855 = vunpack.c.h.b16 %v724
    %v856 = vunpack.c.l.b16 %v725
    %v857 = vunpack.c.h.b16 %v725
    %v858 = vunpack.c.l.b16 %v726
    %v859 = vunpack.c.h.b16 %v726
    %v860 = vunpack.c.l.b16 %v727
    %v861 = vunpack.c.h.b16 %v727
    %v862 = vunpack.c.l.b16 %v728
    %v863 = vunpack.c.h.b16 %v728
    %v864 = vunpack.c.l.b16 %v729
    %v865 = vunpack.c.h.b16 %v729
    %v866 = vunpack.c.l.b16 %v730
    %v867 = vunpack.c.h.b16 %v730
    %v868 = vunpack.c.l.b16 %v731
    %v869 = vunpack.c.h.b16 %v731
    %v870 = vunpack.c.l.b16 %v732
    %v871 = vunpack.c.h.b16 %v732
    %v872 = vunpack.c.l.b16 %v733
    %v873 = vunpack.c.h.b16 %v733
    %v874 = vunpack.c.l.b16 %v734
    %v875 = vunpack.c.h.b16 %v734
    %v876 = vunpack.c.l.b16 %v735
    %v877 = vunpack.c.h.b16 %v735
    %v878 = vunpack.c.l.b16 %v736
    %v879 = vunpack.c.h.b16 %v736
    %v880 = vunpack.c.l.b16 %v737
    %v881 = vunpack.c.h.b16 %v737
    %v882 = vunpack.c.l.b16 %v738
    %v883 = vunpack.c.h.b16 %v738
    %v884 = vunpack.c.l.b16 %v739
    %v885 = vunpack.c.h.b16 %v739
    %v886 = vunpack.c.l.b16 %v740
    %v887 = vunpack.c.h.b16 %v740
    %v888 = vunpack.c.l.b16 %v741
    %v889 = vunpack.c.h.b16 %v741
    %v890 = vunpack.c.l.b16 %v742
    %v891 = vunpack.c.h.b16 %v742
    %v892 = vunpack.c.l.b16 %v743
    %v893 = vunpack.c.h.b16 %v743
    %v894 = vunpack.c.l.b16 %v744
    %v895 = vunpack.c.h.b16 %v744
    %v896 = vunpack.c.l.b16 %v745
    %v897 = vunpack.c.h.b16 %v745
    %v898 = vunpack.c.l.b16 %v746
    %v899 = vunpack.c.h.b16 %v746
    %v900 = vunpack.c.l.b16 %v747
    %v901 = vunpack.c.h.b16 %v747
    %v902 = vunpack.c.l.b16 %v748
    %v903 = vunpack.c.h.b16 %v748
    %v904 = vunpack.c.l.b16 %v749
    %v905 = vunpack.c.h.b16 %v749
    %v906 = vunpack.c.l.b16 %v750
    %v907 = vunpack.c.h.b16 %v750
    %v908 = vunpack.c.l.b16 %v751
    %v909 = vunpack.c.h.b16 %v751
    %v910 = vunpack.c.l.b16 %v752
    %v911 = vunpack.c.h.b16 %v752
    %v912 = vunpack.c.l.b16 %v753
    %v913 = vunpack.c.h.b16 %v753
    %v914 = vunpack.c.l.b16 %v754
    %v915 = vunpack.c.h.b16 %v754
    %v916 = vunpack.c.l.b16 %v755
    %v917 = vunpack.c.h.b16 %v755
    %v918 = vunpack.c.l.b16 %v756
    %v919 = vunpack.c.h.b16 %v756
    %v920 = vunpack.c.l.b16 %v757
    %v921 = vunpack.c.h.b16 %v757
    %v922 = vunpack.c.l.b16 %v758
    %v923 = vunpack.c.h.b16 %v758
    %v924 = vunpack.c.l.b16 %v759
    %v925 = vunpack.c.h.b16 %v759
    %v926 = vunpack.c.l.b16 %v760
    %v927 = vunpack.c.h.b16 %v760
    %v928 = vunpack.c.l.b16 %v761
    %v929 = vunpack.c.h.b16 %v761
    %v930 = vunpack.c.l.b16 %v762
    %v931 = vunpack.c.h.b16 %v762
    %v932 = vunpack.c.l.b16 %v763
    %v933 = vunpack.c.h.b16 %v763
    %v934 = vunpack.c.l.b16 %v764
    %v935 = vunpack.c.h.b16 %v764
    %v936 = vunpack.c.l.b16 %v765
    %v937 = vunpack.c.h.b16 %v765
    %v938 = vunpack.c.l.b16 %v766
    %v939 = vunpack.c.h.b16 %v766
    %v940 = vunpack.c.l.b16 %v767
    %v941 = vunpack.c.h.b16 %v767
    %v942 = vunpack.c.l.b16 %v768
    %v943 = vunpack.c.h.b16 %v768
    %v944 = vunpack.c.l.b16 %v769
    %v945 = vunpack.c.h.b16 %v769
    %v946 = vunpack.c.l.b16 %v770
    %v947 = vunpack.c.h.b16 %v770
    %v948 = vunpack.c.l.b16 %v771
    %v949 = vunpack.c.h.b16 %v771
    %v950 = vunpack.c.l.b16 %v772
    %v951 = vunpack.c.h.b16 %v772
    %v952 = vunpack.c.l.b16 %v773
    %v953 = vunpack.c.h.b16 %v773
    %v954 = vunpack.c.l.b16 %v774
    %v955 = vunpack.c.h.b16 %v774
    %v956 = vunpack.c.l.b16 %v775
    %v957 = vunpack.c.h.b16 %v775
    %v958 = vunpack.c.l.b16 %v776
    %v959 = vunpack.c.h.b16 %v776
    %v960 = vunpack.c.l.b16 %v777
    %v961 = vunpack.c.h.b16 %v777
    %v962 = vunpack.c.l.b16 %v778
    %v963 = vunpack.c.h.b16 %v778
    %v964 = vunpack.c.l.b16 %v779
    %v965 = vunpack.c.h.b16 %v779
    %v966 = vunpack.c.l.b16 %v780
    %v967 = vunpack.c.h.b16 %v780
    %v968 = vunpack.c.l.b16 %v781
    %v969 = vunpack.c.h.b16 %v781
    %v970 = vunpack.c.l.b16 %v782
    %v971 = vunpack.c.h.b16 %v782
    %v972 = vunpack.c.l.b16 %v783
    %v973 = vunpack.c.h.b16 %v783
    %v974 = vunpack.c.l.b16 %v784
    %v975 = vunpack.c.h.b16 %v784
    %v976 = vunpack.c.l.b16 %v785
    %v977 = vunpack.c.h.b16 %v785
    %v978 = vpack.c.b16 %v852, %v850
    %v979 = vpack.c.b16 %v853, %v851
    %v980 = vpack.c.b16 %v856, %v854
    %v981 = vpack.c.b16 %v857, %v855
    %v982 = vpack.c.b16 %v860, %v858
    %v983 = vpack.c.b16 %v861, %v859
    %v984 = vpack.c.b16 %v864, %v862
    %v985 = vpack.c.b16 %v865, %v863
    %v986 = vpack.c.b16 %v868, %v866
    %v987 = vpack.c.b16 %v869, %v867
    %v988 = vpack.c.b16 %v872, %v870
    %v989 = vpack.c.b16 %v873, %v871
    %v990 = vpack.c.b16 %v876, %v874
    %v991 = vpack.c.b16 %v877, %v875
    %v992 = vpack.c.b16 %v880, %v878
    %v993 = vpack.c.b16 %v881, %v879
    %v994 = vpack.c.b16 %v884, %v882
    %v995 = vpack.c.b16 %v885, %v883
    %v996 = vpack.c.b16 %v888, %v886
    %v997 = vpack.c.b16 %v889, %v887
    %v998 = vpack.c.b16 %v892, %v890
    %v999 = vpack.c.b16 %v893, %v891
    %v1000 = vpack.c.b16 %v896, %v894
    %v1001 = vpack.c.b16 %v897, %v895
    %v1002 = vpack.c.b16 %v900, %v898
    %v1003 = vpack.c.b16 %v901, %v899
    %v1004 = vpack.c.b16 %v904, %v902
    %v1005 = vpack.c.b16 %v905, %v903
    %v1006 = vpack.c.b16 %v908, %v906
    %v1007 = vpack.c.b16 %v909, %v907
    %v1008 = vpack.c.b16 %v912, %v910
    %v1009 = vpack.c.b16 %v913, %v911
    %v1010 = vpack.c.b16 %v916, %v914
    %v1011 = vpack.c.b16 %v917, %v915
    %v1012 = vpack.c.b16 %v920, %v918
    %v1013 = vpack.c.b16 %v921, %v919
    %v1014 = vpack.c.b16 %v924, %v922
    %v1015 = vpack.c.b16 %v925, %v923
    %v1016 = vpack.c.b16 %v928, %v926
    %v1017 = vpack.c.b16 %v929, %v927
    %v1018 = vpack.c.b16 %v932, %v930
    %v1019 = vpack.c.b16 %v933, %v931
    %v1020 = vpack.c.b16 %v936, %v934
    %v1021 = vpack.c.b16 %v937, %v935
    %v1022 = vpack.c.b16 %v940, %v938
    %v1023 = vpack.c.b16 %v941, %v939
    %v1024 = vpack.c.b16 %v944, %v942
    %v1025 = vpack.c.b16 %v945, %v943
    %v1026 = vpack.c.b16 %v948, %v946
    %v1027 = vpack.c.b16 %v949, %v947
    %v1028 = vpack.c.b16 %v952, %v950
    %v1029 = vpack.c.b16 %v953, %v951
    %v1030 = vpack.c.b16 %v956, %v954
    %v1031 = vpack.c.b16 %v957, %v955
    %v1032 = vpack.c.b16 %v960, %v958
    %v1033 = vpack.c.b16 %v961, %v959
    %v1034 = vpack.c.b16 %v964, %v962
    %v1035 = vpack.c.b16 %v965, %v963
    %v1036 = vpack.c.b16 %v968, %v966
    %v1037 = vpack.c.b16 %v969, %v967
    %v1038 = vpack.c.b16 %v972, %v970
    %v1039 = vpack.c.b16 %v973, %v971
    %v1040 = vpack.c.b16 %v976, %v974
    %v1041 = vpack.c.b16 %v977, %v975
    %1106 = vmatprep.subr.bf16.mxu0 %v993
    %1107 = vmatpush1.bf16.msra.mxu0 %v992
    %1108 = vmatprep.subr.bf16.mxu0 %v991
    %1109 = vmatpush1.bf16.msra.mxu0 %v990
    %1110 = vmatprep.subr.bf16.mxu0 %v989
    %1111 = vmatpush1.bf16.msra.mxu0 %v988
    %1112 = vmatprep.subr.bf16.mxu0 %v987
    %1113 = vmatpush1.bf16.msra.mxu0 %v986
    %1114 = vmatprep.subr.bf16.mxu0 %v985
    %1115 = vmatpush1.bf16.msra.mxu0 %v984
    %1116 = vmatprep.subr.bf16.mxu0 %v983
    %1117 = vmatpush1.bf16.msra.mxu0 %v982
    %1118 = vmatprep.subr.bf16.mxu0 %v981
    %1119 = vmatpush1.bf16.msra.mxu0 %v980
    %1120 = vmatprep.subr.bf16.mxu0 %v979
    %1121 = vmatpush1.bf16.msra.mxu0 %v978
    %1122 = vmatprep.subr.bf16.mxu0 %v1009
    %1123 = vmatpush2.bf16.msra.mxu0 %v1008
    %1124 = vmatprep.subr.bf16.mxu0 %v1007
    %1125 = vmatpush2.bf16.msra.mxu0 %v1006
    %1126 = vmatprep.subr.bf16.mxu0 %v1005
    %1127 = vmatpush2.bf16.msra.mxu0 %v1004
    %1128 = vmatprep.subr.bf16.mxu0 %v1003
    %1129 = vmatpush2.bf16.msra.mxu0 %v1002
    %1130 = vmatprep.subr.bf16.mxu0 %v1001
    %1131 = vmatpush2.bf16.msra.mxu0 %v1000
    %1132 = vmatprep.subr.bf16.mxu0 %v999
    %1133 = vmatpush2.bf16.msra.mxu0 %v998
    %1134 = vmatprep.subr.bf16.mxu0 %v997
    %1135 = vmatpush2.bf16.msra.mxu0 %v996
    %1136 = vmatprep.subr.bf16.mxu0 %v995
    %1137 = vmatpush2.bf16.msra.mxu0 %v994
    %1138 = vmatprep.mubr.bf16.mxu0 %v719
    %1139 = vmatmul.mubr.bf16.gmra.mxu0 %v718
    %v1140 = vpop.f32.mrf.mxu0
    %v1141 = vadd.f32 0.0, %v1140
    %v1142 = vpop.f32.mrf.mxu0
    %v1143 = vadd.f32 0.0, %v1142
    %v1144 = vpop.f32.mrf.mxu0
    %v1145 = vpop.f32.mrf.mxu0
    %1146 = vdwg.mxu0
    %1147 = vmatprep.subr.bf16.mxu0 %v1025
    %1148 = vmatpush1.bf16.msra.mxu0 %v1024
    %1149 = vmatprep.subr.bf16.mxu0 %v1023
    %1150 = vmatpush1.bf16.msra.mxu0 %v1022
    %1151 = vmatprep.subr.bf16.mxu0 %v1021
    %1152 = vmatpush1.bf16.msra.mxu0 %v1020
    %1153 = vmatprep.subr.bf16.mxu0 %v1019
    %1154 = vmatpush1.bf16.msra.mxu0 %v1018
    %1155 = vmatprep.subr.bf16.mxu0 %v1017
    %1156 = vmatpush1.bf16.msra.mxu0 %v1016
    %1157 = vmatprep.subr.bf16.mxu0 %v1015
    %1158 = vmatpush1.bf16.msra.mxu0 %v1014
    %1159 = vmatprep.subr.bf16.mxu0 %v1013
    %1160 = vmatpush1.bf16.msra.mxu0 %v1012
    %1161 = vmatprep.subr.bf16.mxu0 %v1011
    %1162 = vmatpush1.bf16.msra.mxu0 %v1010
    %1163 = vmatprep.subr.bf16.mxu0 %v1041
    %1164 = vmatpush2.bf16.msra.mxu0 %v1040
    %1165 = vmatprep.subr.bf16.mxu0 %v1039
    %1166 = vmatpush2.bf16.msra.mxu0 %v1038
    %1167 = vmatprep.subr.bf16.mxu0 %v1037
    %1168 = vmatpush2.bf16.msra.mxu0 %v1036
    %1169 = vmatprep.subr.bf16.mxu0 %v1035
    %1170 = vmatpush2.bf16.msra.mxu0 %v1034
    %1171 = vmatprep.subr.bf16.mxu0 %v1033
    %1172 = vmatpush2.bf16.msra.mxu0 %v1032
    %1173 = vmatprep.subr.bf16.mxu0 %v1031
    %1174 = vmatpush2.bf16.msra.mxu0 %v1030
    %1175 = vmatprep.subr.bf16.mxu0 %v1029
    %1176 = vmatpush2.bf16.msra.mxu0 %v1028
    %1177 = vmatprep.subr.bf16.mxu0 %v1027
    %1178 = vmatpush2.bf16.msra.mxu0 %v1026
    %1179 = vmatprep.mubr.bf16.mxu0 %v721
    %1180 = vmatmul.mubr.bf16.gmra.mxu0 %v720
    %v1181 = vpop.f32.mrf.mxu0
    %v1182 = vadd.f32 %v1141, %v1181
    %v1183 = vpop.f32.mrf.mxu0
    %v1184 = vadd.f32 %v1143, %v1183
    %v1185 = vpop.f32.mrf.mxu0
    %v1186 = vpop.f32.mrf.mxu0
    %1187 = vdwg.mxu0
    %v1188 = vrot.slane %v1182, 4
    %v1189 = vadd.f32 %v1182, %v1188
    %v1190 = vrot.slane %v1189, 2
    %v1191 = vadd.f32 %v1189, %v1190
    %v1192 = vrot.slane %v1191, 1
    %v1193 = vadd.f32 %v1191, %v1192
    %v1194 = vrot.slane %v1184, 4
    %v1195 = vadd.f32 %v1184, %v1194
    %v1196 = vrot.slane %v1195, 2
    %v1197 = vadd.f32 %v1195, %v1196
    %v1198 = vrot.slane %v1197, 1
    %v1199 = vadd.f32 %v1197, %v1198
    %v1200 = vmul.f32 %v1182, %v1182
    %v1201 = vmul.f32 %v1184, %v1184
    %v1202 = vrot.slane %v1200, 4
    %v1203 = vadd.f32 %v1200, %v1202
    %v1204 = vrot.slane %v1203, 2
    %v1205 = vadd.f32 %v1203, %v1204
    %v1206 = vrot.slane %v1205, 1
    %v1207 = vadd.f32 %v1205, %v1206
    %v1208 = vrot.slane %v1201, 4
    %v1209 = vadd.f32 %v1201, %v1208
    %v1210 = vrot.slane %v1209, 2
    %v1211 = vadd.f32 %v1209, %v1210
    %v1212 = vrot.slane %v1211, 1
    %v1213 = vadd.f32 %v1211, %v1212
    %v1214 = vmul.f32 %v1193, 0.125
    %v1215 = vmul.f32 %v1199, 0.125
    %v1216 = vmul.f32 %v1207, 0.125
    %v1217 = vmul.f32 %v1213, 0.125
    %v1218 = vmul.f32 %v1214, %v1214
    %v1219 = vmul.f32 %v1215, %v1215
    %v1220 = vsub.f32 %v1216, %v1218
    %v1221 = vsub.f32 %v1217, %v1219
    %v1222 = vmax.f32 %v1220, 0.0
    %v1223 = vmax.f32 %v1221, 0.0
    %s1224 = scalar_lea.vmem [#allocation7], 2
    %v1225 = vld [vmem:[%s1224] ss:$8 sm:$0x3]
    %s1226 = scalar_lea.vmem [#allocation7], 3
    %v1227 = vld [vmem:[%s1226] ss:$8 sm:$0x3]
    %v1228 = vsub.f32 %v1182, %v1214
    %v1229 = vsub.f32 %v1184, %v1215
    %v1230 = vadd.f32 %v1222, 1e-05
    %v1231 = vadd.f32 %v1223, 1e-05
    %v1232 = vrsqrt.pop %v1230
    %v1233 = vrsqrt.pop %v1231
    %v1234 = vmul.f32 %v1228, %v1232
    %v1235 = vmul.f32 %v1229, %v1233
    %v1237 = vlaneseq
    %v1238 = vshrl.u32 %v1237, 7
    %v1239 = vsub.s32 0, %v1238
    %v1240 = vrot.slane %v1225, %v1239
    %v1241 = vlaneseq
    %v1242 = vshrl.u32 %v1241, 7
    %v1243 = vsub.s32 1, %v1242
    %v1244 = vrot.slane %v1225, %v1243
    %v1247 = vmul.f32 %v1234, %v1240
    %v1248 = vmul.f32 %v1235, %v1244
    %v1250 = vlaneseq
    %v1251 = vshrl.u32 %v1250, 7
    %v1252 = vsub.s32 0, %v1251
    %v1253 = vrot.slane %v1227, %v1252
    %v1254 = vlaneseq
    %v1255 = vshrl.u32 %v1254, 7
    %v1256 = vsub.s32 1, %v1255
    %v1257 = vrot.slane %v1227, %v1256
    %v1260 = vadd.f32 %v1247, %v1253
    %v1261 = vadd.f32 %v1248, %v1257
    %vm1262 = vcmp.gt.f32.partialorder %v1260, 0.0
    %vm1263 = vcmp.gt.f32.partialorder %v1261, 0.0
    %v1264 = vmul.f32 %v1260, 0.01
    %v1265 = vmul.f32 %v1261, 0.01
    %v1266 = vsel %vm1262, %v1260, %v1264
    %v1267 = vsel %vm1263, %v1261, %v1265
    %v1268 = vmul.f32 %v1266, %v90
    %v1269 = vmul.f32 %v1267, %v91
    %v1270 = vpack.c.bf16 %v1268, %v1268
    %v1271 = vpack.c.bf16 %v1269, %v1269
    %v1272 = vld [vmem:[%s3] sm:$0xf]
    %v1273 = vld [vmem:[%s3 + $0x4] sm:$0xf]
    %v1274 = vld [vmem:[%s3 + $0x8] sm:$0xf]
    %v1275 = vld [vmem:[%s3 + $0xc] sm:$0xf]
    %v1276 = vld [vmem:[%s3 + $0x10] sm:$0xf]
    %v1277 = vld [vmem:[%s3 + $0x14] sm:$0xf]
    %v1278 = vld [vmem:[%s3 + $0x18] sm:$0xf]
    %v1279 = vld [vmem:[%s3 + $0x1c] sm:$0xf]
    %v1280 = vld [vmem:[%s3 + $0x20] sm:$0xf]
    %v1281 = vld [vmem:[%s3 + $0x24] sm:$0xf]
    %v1282 = vld [vmem:[%s3 + $0x28] sm:$0xf]
    %v1283 = vld [vmem:[%s3 + $0x2c] sm:$0xf]
    %v1284 = vld [vmem:[%s3 + $0x30] sm:$0xf]
    %v1285 = vld [vmem:[%s3 + $0x34] sm:$0xf]
    %v1286 = vld [vmem:[%s3 + $0x38] sm:$0xf]
    %v1287 = vld [vmem:[%s3 + $0x3c] sm:$0xf]
    %v1288 = vld [vmem:[%s3 + $0x40] sm:$0xf]
    %v1289 = vld [vmem:[%s3 + $0x44] sm:$0xf]
    %v1290 = vld [vmem:[%s3 + $0x48] sm:$0xf]
    %v1291 = vld [vmem:[%s3 + $0x4c] sm:$0xf]
    %v1292 = vld [vmem:[%s3 + $0x50] sm:$0xf]
    %v1293 = vld [vmem:[%s3 + $0x54] sm:$0xf]
    %v1294 = vld [vmem:[%s3 + $0x58] sm:$0xf]
    %v1295 = vld [vmem:[%s3 + $0x5c] sm:$0xf]
    %v1296 = vld [vmem:[%s3 + $0x60] sm:$0xf]
    %v1297 = vld [vmem:[%s3 + $0x64] sm:$0xf]
    %v1298 = vld [vmem:[%s3 + $0x68] sm:$0xf]
    %v1299 = vld [vmem:[%s3 + $0x6c] sm:$0xf]
    %v1300 = vld [vmem:[%s3 + $0x70] sm:$0xf]
    %v1301 = vld [vmem:[%s3 + $0x74] sm:$0xf]
    %v1302 = vld [vmem:[%s3 + $0x78] sm:$0xf]
    %v1303 = vld [vmem:[%s3 + $0x7c] sm:$0xf]
    %v1336 = vunpack.c.l.b16 %v1272
    %v1337 = vunpack.c.l.b16 %v1273
    %v1338 = vunpack.c.l.b16 %v1274
    %v1339 = vunpack.c.l.b16 %v1275
    %v1340 = vunpack.c.l.b16 %v1276
    %v1341 = vunpack.c.l.b16 %v1277
    %v1342 = vunpack.c.l.b16 %v1278
    %v1343 = vunpack.c.l.b16 %v1279
    %v1344 = vunpack.c.l.b16 %v1280
    %v1345 = vunpack.c.l.b16 %v1281
    %v1346 = vunpack.c.l.b16 %v1282
    %v1347 = vunpack.c.l.b16 %v1283
    %v1348 = vunpack.c.l.b16 %v1284
    %v1349 = vunpack.c.l.b16 %v1285
    %v1350 = vunpack.c.l.b16 %v1286
    %v1351 = vunpack.c.l.b16 %v1287
    %v1352 = vunpack.c.l.b16 %v1288
    %v1353 = vunpack.c.l.b16 %v1289
    %v1354 = vunpack.c.l.b16 %v1290
    %v1355 = vunpack.c.l.b16 %v1291
    %v1356 = vunpack.c.l.b16 %v1292
    %v1357 = vunpack.c.l.b16 %v1293
    %v1358 = vunpack.c.l.b16 %v1294
    %v1359 = vunpack.c.l.b16 %v1295
    %v1360 = vunpack.c.l.b16 %v1296
    %v1361 = vunpack.c.l.b16 %v1297
    %v1362 = vunpack.c.l.b16 %v1298
    %v1363 = vunpack.c.l.b16 %v1299
    %v1364 = vunpack.c.l.b16 %v1300
    %v1365 = vunpack.c.l.b16 %v1301
    %v1366 = vunpack.c.l.b16 %v1302
    %v1367 = vunpack.c.l.b16 %v1303
    %v1368 = vpack.c.b16 %v1337, %v1336
    %v1369 = vpack.c.b16 %v1339, %v1338
    %v1370 = vpack.c.b16 %v1341, %v1340
    %v1371 = vpack.c.b16 %v1343, %v1342
    %v1372 = vpack.c.b16 %v1345, %v1344
    %v1373 = vpack.c.b16 %v1347, %v1346
    %v1374 = vpack.c.b16 %v1349, %v1348
    %v1375 = vpack.c.b16 %v1351, %v1350
    %v1376 = vpack.c.b16 %v1353, %v1352
    %v1377 = vpack.c.b16 %v1355, %v1354
    %v1378 = vpack.c.b16 %v1357, %v1356
    %v1379 = vpack.c.b16 %v1359, %v1358
    %v1380 = vpack.c.b16 %v1361, %v1360
    %v1381 = vpack.c.b16 %v1363, %v1362
    %v1382 = vpack.c.b16 %v1365, %v1364
    %v1383 = vpack.c.b16 %v1367, %v1366
    %1400 = vmatprep.subr.bf16.mxu0 0
    %1401 = vmatpush1.bf16.msra.mxu0 %v1375
    %1402 = vmatprep.subr.bf16.mxu0 0
    %1403 = vmatpush1.bf16.msra.mxu0 %v1374
    %1404 = vmatprep.subr.bf16.mxu0 0
    %1405 = vmatpush1.bf16.msra.mxu0 %v1373
    %1406 = vmatprep.subr.bf16.mxu0 0
    %1407 = vmatpush1.bf16.msra.mxu0 %v1372
    %1408 = vmatprep.subr.bf16.mxu0 0
    %1409 = vmatpush1.bf16.msra.mxu0 %v1371
    %1410 = vmatprep.subr.bf16.mxu0 0
    %1411 = vmatpush1.bf16.msra.mxu0 %v1370
    %1412 = vmatprep.subr.bf16.mxu0 0
    %1413 = vmatpush1.bf16.msra.mxu0 %v1369
    %1414 = vmatprep.subr.bf16.mxu0 0
    %1415 = vmatpush1.bf16.msra.mxu0 %v1368
    %1416 = vmatprep.subr.bf16.mxu0 0
    %1417 = vmatpush2.bf16.msra.mxu0 %v1383
    %1418 = vmatprep.subr.bf16.mxu0 0
    %1419 = vmatpush2.bf16.msra.mxu0 %v1382
    %1420 = vmatprep.subr.bf16.mxu0 0
    %1421 = vmatpush2.bf16.msra.mxu0 %v1381
    %1422 = vmatprep.subr.bf16.mxu0 0
    %1423 = vmatpush2.bf16.msra.mxu0 %v1380
    %1424 = vmatprep.subr.bf16.mxu0 0
    %1425 = vmatpush2.bf16.msra.mxu0 %v1379
    %1426 = vmatprep.subr.bf16.mxu0 0
    %1427 = vmatpush2.bf16.msra.mxu0 %v1378
    %1428 = vmatprep.subr.bf16.mxu0 0
    %1429 = vmatpush2.bf16.msra.mxu0 %v1377
    %1430 = vmatprep.subr.bf16.mxu0 0
    %1431 = vmatpush2.bf16.msra.mxu0 %v1376
    %1432 = vmatprep.mubr.bf16.mxu0 %v1271
    %1433 = vmatmul.mubr.bf16.gmra.mxu0 %v1270
    %v1434 = vpop.f32.mrf.mxu0
    %v1435 = vadd.f32 0.0, %v1434
    %v1436 = vpop.f32.mrf.mxu0
    %v1437 = vpop.f32.mrf.mxu0
    %v1438 = vpop.f32.mrf.mxu0
    %1439 = vdwg.mxu0
    %v1440 = vrot.slane %v1435, 4
    %v1441 = vadd.f32 %v1435, %v1440
    %v1442 = vrot.slane %v1441, 2
    %v1443 = vadd.f32 %v1441, %v1442
    %v1444 = vrot.slane %v1443, 1
    %v1445 = vadd.f32 %v1443, %v1444
    %v1446 = vmul.f32 %v1435, %v1435
    %v1447 = vrot.slane %v1446, 4
    %v1448 = vadd.f32 %v1446, %v1447
    %v1449 = vrot.slane %v1448, 2
    %v1450 = vadd.f32 %v1448, %v1449
    %v1451 = vrot.slane %v1450, 1
    %v1452 = vadd.f32 %v1450, %v1451
    %v1453 = vmul.f32 %v1445, 0.125
    %v1454 = vmul.f32 %v1452, 0.125
    %v1455 = vmul.f32 %v1453, %v1453
    %v1456 = vsub.f32 %v1454, %v1455
    %v1457 = vmax.f32 %v1456, 0.0
    %v1458 = vld [vmem:[#allocation7 + $0x4] ss:$0 sm:$0xff]
    %v1459 = vld [vmem:[#allocation7 + $0x5] ss:$0 sm:$0xff]
    %v1460 = vsub.f32 %v1435, %v1453
    %v1461 = vadd.f32 %v1457, 1e-05
    %v1462 = vrsqrt.pop %v1461
    %v1463 = vmul.f32 %v1460, %v1462
    %v1464 = vmul.f32 %v1463, %v1458
    %v1465 = vadd.f32 %v1464, %v1459
    %vm1466 = vcmp.gt.f32.partialorder %v1465, 0.0
    %v1467 = vmul.f32 %v1465, 0.01
    %v1468 = vsel %vm1466, %v1465, %v1467
    %v1469 = vmul.f32 %v1468, %v92
    %v1470 = vpack.c.bf16 %v1469, %v1469
    %v1471 = vld [vmem:[%s4] sm:$0xf]
    %v1472 = vld [vmem:[%s4 + $0x4] sm:$0xf]
    %v1473 = vld [vmem:[%s4 + $0x8] sm:$0xf]
    %v1474 = vld [vmem:[%s4 + $0xc] sm:$0xf]
    %v1475 = vld [vmem:[%s4 + $0x10] sm:$0xf]
    %v1476 = vld [vmem:[%s4 + $0x14] sm:$0xf]
    %v1477 = vld [vmem:[%s4 + $0x18] sm:$0xf]
    %v1478 = vld [vmem:[%s4 + $0x1c] sm:$0xf]
    %v1479 = vld [vmem:[%s4 + $0x20] sm:$0xf]
    %v1480 = vld [vmem:[%s4 + $0x24] sm:$0xf]
    %v1481 = vld [vmem:[%s4 + $0x28] sm:$0xf]
    %v1482 = vld [vmem:[%s4 + $0x2c] sm:$0xf]
    %v1483 = vld [vmem:[%s4 + $0x30] sm:$0xf]
    %v1484 = vld [vmem:[%s4 + $0x34] sm:$0xf]
    %v1485 = vld [vmem:[%s4 + $0x38] sm:$0xf]
    %v1486 = vld [vmem:[%s4 + $0x3c] sm:$0xf]
    %v1503 = vunpack.c.l.b16 %v1471
    %v1504 = vunpack.c.l.b16 %v1472
    %v1505 = vunpack.c.l.b16 %v1473
    %v1506 = vunpack.c.l.b16 %v1474
    %v1507 = vunpack.c.l.b16 %v1475
    %v1508 = vunpack.c.l.b16 %v1476
    %v1509 = vunpack.c.l.b16 %v1477
    %v1510 = vunpack.c.l.b16 %v1478
    %v1511 = vunpack.c.l.b16 %v1479
    %v1512 = vunpack.c.l.b16 %v1480
    %v1513 = vunpack.c.l.b16 %v1481
    %v1514 = vunpack.c.l.b16 %v1482
    %v1515 = vunpack.c.l.b16 %v1483
    %v1516 = vunpack.c.l.b16 %v1484
    %v1517 = vunpack.c.l.b16 %v1485
    %v1518 = vunpack.c.l.b16 %v1486
    %v1519 = vpack.c.b16 %v1504, %v1503
    %v1520 = vpack.c.b16 %v1506, %v1505
    %v1521 = vpack.c.b16 %v1508, %v1507
    %v1522 = vpack.c.b16 %v1510, %v1509
    %v1523 = vpack.c.b16 %v1512, %v1511
    %v1524 = vpack.c.b16 %v1514, %v1513
    %v1525 = vpack.c.b16 %v1516, %v1515
    %v1526 = vpack.c.b16 %v1518, %v1517
    %1535 = vmatprep.subr.bf16.mxu0 0
    %1536 = vmatpush1.bf16.msra.mxu0 %v1526
    %1537 = vmatprep.subr.bf16.mxu0 0
    %1538 = vmatpush1.bf16.msra.mxu0 %v1525
    %1539 = vmatprep.subr.bf16.mxu0 0
    %1540 = vmatpush1.bf16.msra.mxu0 %v1524
    %1541 = vmatprep.subr.bf16.mxu0 0
    %1542 = vmatpush1.bf16.msra.mxu0 %v1523
    %1543 = vmatprep.subr.bf16.mxu0 0
    %1544 = vmatpush1.bf16.msra.mxu0 %v1522
    %1545 = vmatprep.subr.bf16.mxu0 0
    %1546 = vmatpush1.bf16.msra.mxu0 %v1521
    %1547 = vmatprep.subr.bf16.mxu0 0
    %1548 = vmatpush1.bf16.msra.mxu0 %v1520
    %1549 = vmatprep.subr.bf16.mxu0 0
    %1550 = vmatpush1.bf16.msra.mxu0 %v1519
    %1551 = vmatprep.subr.bf16.mxu0 0
    %1552 = vmatpush2.bf16.msra.mxu0 0
    %1553 = vmatprep.subr.bf16.mxu0 0
    %1554 = vmatpush2.bf16.msra.mxu0 0
    %1555 = vmatprep.subr.bf16.mxu0 0
    %1556 = vmatpush2.bf16.msra.mxu0 0
    %1557 = vmatprep.subr.bf16.mxu0 0
    %1558 = vmatpush2.bf16.msra.mxu0 0
    %1559 = vmatprep.subr.bf16.mxu0 0
    %1560 = vmatpush2.bf16.msra.mxu0 0
    %1561 = vmatprep.subr.bf16.mxu0 0
    %1562 = vmatpush2.bf16.msra.mxu0 0
    %1563 = vmatprep.subr.bf16.mxu0 0
    %1564 = vmatpush2.bf16.msra.mxu0 0
    %1565 = vmatprep.subr.bf16.mxu0 0
    %1566 = vmatpush2.bf16.msra.mxu0 0
    %1567 = vmatprep.mubr.bf16.mxu0 0
    %1568 = vmatmul.mubr.bf16.gmra.mxu0 %v1470
    %v1569 = vpop.f32.mrf.mxu0
    %v1570 = vadd.f32 0.0, %v1569
    %v1571 = vpop.f32.mrf.mxu0
    %v1572 = vpop.f32.mrf.mxu0
    %v1573 = vpop.f32.mrf.mxu0
    %1574 = vdwg.mxu0
    %vm1575 = vcmask 523264
    %v1576 = vsel %vm1575, %v1570, 0.0
    %v1577 = vrot.slane %v1576, 4
    %v1578 = vadd.f32 %v1576, %v1577
    %v1579 = vrot.slane %v1578, 2
    %v1580 = vadd.f32 %v1578, %v1579
    %v1581 = vrot.slane %v1580, 1
    %v1582 = vadd.f32 %v1580, %v1581
    %v1583 = vmul.f32 %v1570, %v1570
    %v1584 = vsel %vm1575, %v1583, 0.0
    %v1585 = vrot.slane %v1584, 4
    %v1586 = vadd.f32 %v1584, %v1585
    %v1587 = vrot.slane %v1586, 2
    %v1588 = vadd.f32 %v1586, %v1587
    %v1589 = vrot.slane %v1588, 1
    %v1590 = vadd.f32 %v1588, %v1589
    %v1591 = vmul.f32 %v1582, 0.125
    %v1592 = vmul.f32 %v1590, 0.125
    %v1593 = vmul.f32 %v1591, %v1591
    %v1594 = vsub.f32 %v1592, %v1593
    %v1595 = vmax.f32 %v1594, 0.0
    %v1596 = vld [vmem:[#allocation7 + $0x6] ss:$0 sm:$0xff]
    %v1597 = vld [vmem:[#allocation7 + $0x7] ss:$0 sm:$0xff]
    %v1598 = vsub.f32 %v1570, %v1591
    %v1599 = vadd.f32 %v1595, 1e-05
    %v1600 = vrsqrt.pop %v1599
    %v1601 = vmul.f32 %v1598, %v1600
    %v1602 = vmul.f32 %v1601, %v1596
    %v1603 = vadd.f32 %v1602, %v1597
    %vm1604 = vcmp.gt.f32.partialorder %v1603, 0.0
    %v1605 = vmul.f32 %v1603, 0.01
    %v1606 = vsel %vm1604, %v1603, %v1605
    %v1607 = vld [vmem:[#allocation7 + $0x20] ss:$0 sm:$0xff]
    %v1608 = vpack.c.bf16 %v1606, %v1606
    %v1609 = vld [vmem:[%s5] sm:$0xf]
    %v1610 = vld [vmem:[%s5 + $0x4] sm:$0xf]
    %v1611 = vld [vmem:[%s5 + $0x8] sm:$0xf]
    %v1612 = vld [vmem:[%s5 + $0xc] sm:$0xf]
    %v1613 = vld [vmem:[%s5 + $0x10] sm:$0xf]
    %v1614 = vld [vmem:[%s5 + $0x14] sm:$0xf]
    %v1615 = vld [vmem:[%s5 + $0x18] sm:$0xf]
    %v1616 = vld [vmem:[%s5 + $0x1c] sm:$0xf]
    %v1625 = vunpack.c.l.b16 %v1609
    %v1626 = vunpack.c.l.b16 %v1610
    %v1627 = vunpack.c.l.b16 %v1611
    %v1628 = vunpack.c.l.b16 %v1612
    %v1629 = vunpack.c.l.b16 %v1613
    %v1630 = vunpack.c.l.b16 %v1614
    %v1631 = vunpack.c.l.b16 %v1615
    %v1632 = vunpack.c.l.b16 %v1616
    %v1633 = vpack.c.b16 %v1626, %v1625
    %v1634 = vpack.c.b16 %v1628, %v1627
    %v1635 = vpack.c.b16 %v1630, %v1629
    %v1636 = vpack.c.b16 %v1632, %v1631
    %v1642 = vsel %vm1575, %v1608, 0
    %1644 = vmatprep.subr.bf16.mxu0 0
    %1645 = vmatpush1.bf16.msra.mxu0 0
    %1646 = vmatprep.subr.bf16.mxu0 0
    %1647 = vmatpush1.bf16.msra.mxu0 0
    %1648 = vmatprep.subr.bf16.mxu0 0
    %1649 = vmatpush1.bf16.msra.mxu0 0
    %1650 = vmatprep.subr.bf16.mxu0 0
    %1651 = vmatpush1.bf16.msra.mxu0 0
    %1652 = vmatprep.subr.bf16.mxu0 0
    %1653 = vmatpush1.bf16.msra.mxu0 %v1636
    %1654 = vmatprep.subr.bf16.mxu0 0
    %1655 = vmatpush1.bf16.msra.mxu0 %v1635
    %1656 = vmatprep.subr.bf16.mxu0 0
    %1657 = vmatpush1.bf16.msra.mxu0 %v1634
    %1658 = vmatprep.subr.bf16.mxu0 0
    %1659 = vmatpush1.bf16.msra.mxu0 %v1633
    %1660 = vmatprep.subr.bf16.mxu0 0
    %1661 = vmatpush2.bf16.msra.mxu0 0
    %1662 = vmatprep.subr.bf16.mxu0 0
    %1663 = vmatpush2.bf16.msra.mxu0 0
    %1664 = vmatprep.subr.bf16.mxu0 0
    %1665 = vmatpush2.bf16.msra.mxu0 0
    %1666 = vmatprep.subr.bf16.mxu0 0
    %1667 = vmatpush2.bf16.msra.mxu0 0
    %1668 = vmatprep.subr.bf16.mxu0 0
    %1669 = vmatpush2.bf16.msra.mxu0 0
    %1670 = vmatprep.subr.bf16.mxu0 0
    %1671 = vmatpush2.bf16.msra.mxu0 0
    %1672 = vmatprep.subr.bf16.mxu0 0
    %1673 = vmatpush2.bf16.msra.mxu0 0
    %1674 = vmatprep.subr.bf16.mxu0 0
    %1675 = vmatpush2.bf16.msra.mxu0 0
    %1676 = vmatprep.mubr.bf16.mxu0 0
    %1677 = vmatmul.mubr.bf16.gmra.mxu0 %v1642
    %v1678 = vpop.f32.mrf.mxu0
    %v1679 = vadd.f32 %v1607, %v1678
    %v1680 = vpop.f32.mrf.mxu0
    %v1681 = vpop.f32.mrf.mxu0
    %v1682 = vpop.f32.mrf.mxu0
    %1683 = vdwg.mxu0
    %vm1684 = vcmask 261120
    %1685 = vst.msk [vmem:[#allocation10] sm:$0xff] %vm1684, %v1679
    // Predicated region
    $region50: #{tpu_custom_call.1} parent=1 // pred_check
      _
    $region51: #{tpu_custom_call.1} parent=1 // pred_check_branch
      %1687 = sbr.rel (0) target = $region53
    $region52: #{tpu_custom_call.1} parent=1 // pred_region
      %s1689 = ssub.s32 128, 128
      %1690 = vsyncadd [#allocation4], %s1689
      %s1692 = sshll.u32 [#allocation10], 4
      %s1693 = int_to_ptr.vmem [resolvable:$true] %s1692
      %1695 = dma.vmem_to_hbm [thread:$0]  %s1693, 128, %s8, [#allocation4]
    $region53: #{tpu_custom_call.1} parent=1 // pred_fallthru
      _
    // Predicated region
    $region54: #{tpu_custom_call.1} parent=1 // pred_check
      _
    $region55: #{tpu_custom_call.1} parent=1 // pred_check_branch
      %1697 = sbr.rel (0) target = $region57
    $region56: #{tpu_custom_call.1} parent=1 // pred_region
      %1698 = dma.done [#allocation4], 128
    $region57: #{tpu_custom_call.1} parent=1 // pred_fallthru
      _
    %1699 = vsyncpa [#allocation3], 1
    %1700 = vsyncpa [#allocation6], 1
    %1701 = vsyncpa [#allocation9], 1
    %1702 = vsyncpa [#allocation4], 1

</llo_original>
